<compile_context>
chip_gen: v6e
topology: v6e:2x2x1
jax: 0.10.0
libtpu: 0.0.40
codegen_flags: <defaults>
</compile_context>

<pallas_src>
import functools

import jax
import jax.numpy as jnp
from jax import lax
from jax.experimental import pallas as pl
from jax.experimental.pallas import tpu as pltpu


def _round_up(x, m):
    return ((x + m - 1) // m) * m


def _pick_batch_block(B, C_pad, HW_pad):
    """Samples per grid step: amortize step overhead when C is small."""
    bytes_per_sample = C_pad * HW_pad * 4
    vmem_budget = 24 * 1024 * 1024                  # rough per-step budget
    max_by_vmem = max(1, vmem_budget // (8 * bytes_per_sample))
    target = 1 if C_pad >= 256 else min(8, max_by_vmem)
    bb = 1
    for d in range(1, B + 1):
        if B % d == 0 and d <= target:
            bb = d
    return bb


# ---------------------------------------------------------------------------
# Fused kernel: `bb` batch elements per grid step.
#   c_ref, s_ref : (bb, Cp, HWp)  content / style (flattened, padded spatial)
#   w_ref        : (4, Cp, Cp)    packed 1x1 conv weights [Wq, Wk, Wv, Wo]
#   sb_ref       : (Cp, Cp)       precomputed HW * bq @ bk^T score bias
#   b_ref        : (Cp, 2)        packed bias columns [bv, bo]
#   o_ref        : (bb, Cp, HWp)  output
# ---------------------------------------------------------------------------
def _attention_kernel(c_ref, s_ref, w_ref, sb_ref, b_ref, o_ref, *,
                      eps, hw_true, c_true, matmul_dtype):
    bb, C, HWp = c_ref.shape

    wq = w_ref[0]
    wk = w_ref[1]
    wv = w_ref[2]
    wo = w_ref[3]
    score_bias = sb_ref[...]
    bv = b_ref[:, 0:1]                      # (C, 1)
    bo = b_ref[:, 1:2]                      # (C, 1)

    hw_masked = hw_true != HWp
    if hw_masked:
        hw_mask = (lax.broadcasted_iota(jnp.int32, (1, HWp), 1)
                   < hw_true).astype(jnp.float32)
    if c_true != C:
        col_mask = lax.broadcasted_iota(jnp.int32, (1, C), 1) < c_true

    inv_n = 1.0 / hw_true
    inv_nm1 = 1.0 / max(hw_true - 1, 1)     # unbiased variance (torch default)
    mm = matmul_dtype

    def mvn(x):
        # Per-channel mean / unbiased std over the TRUE spatial positions
        # (padded columns are zero, so the sums are already correct).
        mean = jnp.sum(x, axis=-1, keepdims=True) * inv_n
        d = x - mean
        if hw_masked:
            d = d * hw_mask                 # zero padded columns again
        var = jnp.sum(d * d, axis=-1, keepdims=True) * inv_nm1
        return d * lax.rsqrt(var + eps)

    # Static (unrolled) loop over the batch block; every GEMM is a plain 2-D
    # matmul on the MXU.
    for i in range(bb):
        x_c = c_ref[i].astype(jnp.float32)          # (C, HWp)
        x_s = s_ref[i].astype(jnp.float32)          # (C, HWp)
        c_n = mvn(x_c)
        s_n = mvn(x_s)

        # Big GEMM #1 (HW contraction): Gram matrix of normalized features.
        # bf16 operands, f32 accumulation.
        G = lax.dot_general(c_n.astype(mm), s_n.astype(mm),
                            (((1,), (1,)), ((), ())),
                            preferred_element_type=jnp.float32)       # (C, C)

        # scores = Wq @ G @ Wk^T + HW * bq @ bk^T   (small C^3 GEMMs, f32)
        gk = lax.dot_general(G, wk, (((1,), (1,)), ((), ())),
                             preferred_element_type=jnp.float32)      # (C, C)
        scores = jnp.dot(wq, gk,
                         preferred_element_type=jnp.float32) + score_bias

        if c_true != C:
            scores = jnp.where(col_mask, scores, -1e30)

        # Softmax over the last dim (size C); reciprocal on the EUP.
        m = jnp.max(scores, axis=-1, keepdims=True)
        p = jnp.exp(scores - m)
        attn = p * pl.reciprocal(jnp.sum(p, axis=-1, keepdims=True),
                                 approx=True)

        # M = Wo @ attn @ Wv (small); fold all remaining biases into a
        # per-channel column.
        awv = jnp.dot(attn, wv, preferred_element_type=jnp.float32)   # (C, C)
        m_mat = jnp.dot(wo, awv, preferred_element_type=jnp.float32)  # (C, C)
        abv = jnp.dot(attn, bv, preferred_element_type=jnp.float32)   # (C, 1)
        bias_col = jnp.dot(wo, abv,
                           preferred_element_type=jnp.float32) + bo   # (C, 1)

        # Big GEMM #2 (C contraction): da = M @ style, then residual.
        da = jnp.dot(m_mat.astype(mm), x_s.astype(mm),
                     preferred_element_type=jnp.float32)              # (C, HWp)
        o_ref[i] = (da + bias_col + x_c).astype(o_ref.dtype)


# ---------------------------------------------------------------------------
# Wrapper
# ---------------------------------------------------------------------------
def attention_forward(content, style, wq, bq, wk, bk, wv, bv, wo, bo,
                      eps=1e-5, matmul_dtype=jnp.bfloat16):
    B, C, H, W = content.shape
    assert style.shape == content.shape
    HW = H * W
    HW_pad = _round_up(HW, 128)             # lane-dense last dim
    C_pad = _round_up(C, 8)                 # sublane alignment

    # NCHW -> (B, C, HW) is a free reshape; pad to aligned shapes if needed.
    c2 = content.reshape(B, C, HW)
    s2 = style.reshape(B, C, HW)
    if HW_pad != HW or C_pad != C:
        pad = ((0, 0), (0, C_pad - C), (0, HW_pad - HW))
        c2 = jnp.pad(c2, pad)
        s2 = jnp.pad(s2, pad)

    def mat(w):                             # (C, C, 1, 1) -> padded (Cp, Cp)
        m = w.reshape(w.shape[0], -1).astype(jnp.float32)
        if C_pad != C:
            m = jnp.pad(m, ((0, C_pad - C), (0, C_pad - C)))
        return m

    def vec(b):
        v = b.astype(jnp.float32)
        if C_pad != C:
            v = jnp.pad(v, (0, C_pad - C))
        return v

    wq2, wk2, wv2, wo2 = mat(wq), mat(wk), mat(wv), mat(wo)
    bq2, bk2, bv2, bo2 = vec(bq), vec(bk), vec(bv), vec(bo)

    # Pack weights / biases (fewer per-step DMA descriptors); precompute the
    # HW * bq @ bk^T score-bias outer product on the host.
    w_pack = jnp.stack([wq2, wk2, wv2, wo2], axis=0)       # (4, Cp, Cp)
    score_bias = float(HW) * jnp.outer(bq2, bk2)           # (Cp, Cp)
    b_pack = jnp.stack([bv2, bo2], axis=1)                 # (Cp, 2)

    bb = _pick_batch_block(B, C_pad, HW_pad)
    grid = (B // bb,)

    io_spec = pl.BlockSpec((bb, C_pad, HW_pad), lambda b: (b, 0, 0))
    w_spec = pl.BlockSpec((4, C_pad, C_pad), lambda b: (0, 0, 0))
    sb_spec = pl.BlockSpec((C_pad, C_pad), lambda b: (0, 0))
    b_spec = pl.BlockSpec((C_pad, 2), lambda b: (0, 0))

    # Explicit VMEM limit with headroom (double-buffered I/O blocks + resident
    # weights + in-kernel f32 intermediates), clamped to a safe range.
    blk = bb * C_pad * HW_pad * 4
    small = (5 * C_pad * C_pad + 2 * C_pad) * 4
    needed = (3 * 2 * blk                   # content/style/output, 2 buffers
              + 2 * small                   # weights / score bias / biases
              + 3 * blk                     # c_n, s_n, da live per sample
              + 16 * C_pad * C_pad * 4      # small (C,C) temporaries
              + (4 << 20))                  # slack
    vmem_limit = int(min(100 * (1 << 20), max(needed, 32 * (1 << 20))))

    # Advisory cost estimate (reassociated GEMM chain).
    flops = int(B) * (4 * C * C * HW + 8 * C ** 3)
    transcendentals = int(B) * (C * C + 2 * C)
    bytes_accessed = 4 * (3 * int(B) * C_pad * HW_pad
                          + 5 * C_pad * C_pad + 2 * C_pad)

    out = pl.pallas_call(
        functools.partial(_attention_kernel, eps=eps, hw_true=HW,
                          c_true=C, matmul_dtype=matmul_dtype),
        out_shape=jax.ShapeDtypeStruct((B, C_pad, HW_pad), content.dtype),
        grid=grid,
        in_specs=[io_spec, io_spec, w_spec, sb_spec, b_spec],
        out_specs=io_spec,
        compiler_params=pltpu.CompilerParams(
            dimension_semantics=("parallel",),
            vmem_limit_bytes=vmem_limit),
        cost_estimate=pl.CostEstimate(
            flops=flops, transcendentals=transcendentals,
            bytes_accessed=bytes_accessed),
    )(c2, s2, w_pack, score_bias, b_pack)

    return out[:, :C, :HW].reshape(B, C, H, W)


# ---------------------------------------------------------------------------
# Pure-JAX reference for correctness checks
# ---------------------------------------------------------------------------
def attention_ref(content, style, wq, bq, wk, bk, wv, bv, wo, bo, eps=1e-5):
    B, C, H, W = content.shape
    HW = H * W

    def mvn(x):
        xf = x.reshape(B, C, HW)
        mean = jnp.mean(xf, axis=-1, keepdims=True)
        var = jnp.var(xf, axis=-1, ddof=1, keepdims=True)
        return (xf - mean) / jnp.sqrt(var + eps)

    def conv1x1(w, b, x):                   # x: (B, C, HW)
        wm = w.reshape(w.shape[0], -1)
        return jnp.einsum("oc,bch->boh", wm, x) + b[None, :, None]

    cn = mvn(content)
    sn = mvn(style)
    sf = style.reshape(B, C, HW)
    q = conv1x1(wq, bq, cn)
    k = conv1x1(wk, bk, sn)
    v = conv1x1(wv, bv, sf)
    scores = jnp.einsum("bch,bdh->bcd", q, k)
    attn = jax.nn.softmax(scores, axis=-1)
    astyle = jnp.einsum("bcd,bdh->bch", attn, v)
    da = conv1x1(wo, bo, astyle)
    return (da + content.reshape(B, C, HW)).reshape(B, C, H, W)


if __name__ == "__main__":
    # Small shapes consistent with the module: attention(in_planes=C) on NCHW
    # feature maps; content and style share the same shape.
    B, C, H, W = 2, 32, 16, 16

    key = jax.random.PRNGKey(0)
    ks = jax.random.split(key, 10)

    content = jax.random.normal(ks[0], (B, C, H, W), dtype=jnp.float32)
    style = jax.random.normal(ks[1], (B, C, H, W), dtype=jnp.float32)

    scale = 1.0 / (C ** 0.5)
    wq = scale * jax.random.normal(ks[2], (C, C, 1, 1), dtype=jnp.float32)
    wk = scale * jax.random.normal(ks[3], (C, C, 1, 1), dtype=jnp.float32)
    wv = scale * jax.random.normal(ks[4], (C, C, 1, 1), dtype=jnp.float32)
    wo = scale * jax.random.normal(ks[5], (C, C, 1, 1), dtype=jnp.float32)
    bq = 0.1 * jax.random.normal(ks[6], (C,), dtype=jnp.float32)
    bk = 0.1 * jax.random.normal(ks[7], (C,), dtype=jnp.float32)
    bv = 0.1 * jax.random.normal(ks[8], (C,), dtype=jnp.float32)
    bo = 0.1 * jax.random.normal(ks[9], (C,), dtype=jnp.float32)

    y_ref = attention_ref(content, style, wq, bq, wk, bk, wv, bv, wo, bo)

    # f32 MXU path: tight check of the reassociated kernel's semantics.
    y32 = attention_forward(content, style, wq, bq, wk, bk, wv, bv, wo, bo,
                            matmul_dtype=jnp.float32)
    y32 = jax.block_until_ready(y32)
    assert y32.shape == (B, C, H, W)
    err32 = float(jnp.max(jnp.abs(y32 - y_ref)))
    assert jnp.allclose(y32, y_ref, atol=1e-2, rtol=1e-2), err32

    # bf16 MXU operands (f32 accumulation): fast path, looser tolerance
    # (bf16 rounding of the score-path Gram GEMM perturbs the softmax).
    ybf = attention_forward(content, style, wq, bq, wk, bk, wv, bv, wo, bo,
                            matmul_dtype=jnp.bfloat16)
    ybf = jax.block_until_ready(ybf)
    assert ybf.shape == (B, C, H, W)
    errbf = float(jnp.max(jnp.abs(ybf - y_ref)))
    assert jnp.allclose(ybf, y_ref, atol=0.5, rtol=0.1), errbf

    print("KERNEL_OK")
</pallas_src>

<mosaic_0001>
module attributes {stable_mosaic.version = 11 : i64} {
  func.func @_attention_kernel(%arg0: i32, %arg1: memref<2x32x256xf32, #tpu.memory_space<vmem>>, %arg2: memref<2x32x256xf32, #tpu.memory_space<vmem>>, %arg3: memref<4x32x32xf32, #tpu.memory_space<vmem>>, %arg4: memref<32x32xf32, #tpu.memory_space<vmem>>, %arg5: memref<32x2xf32, #tpu.memory_space<vmem>>, %arg6: memref<2x32x256xf32, #tpu.memory_space<vmem>>) attributes {dimension_semantics = [#tpu.dimension_semantics<parallel>], iteration_bounds = array<i64: 1>, scalar_prefetch = 0 : i64, scratch_operands = 0 : i64, tpu.core_type = #tpu.core_type<tc>, window_params = [{transform_indices = @transform_0, window_bounds = array<i64: 2, 32, 256>}, {transform_indices = @transform_1, window_bounds = array<i64: 2, 32, 256>}, {pipeline_mode = #tpu.pipeline_mode<synchronous>, transform_indices = @transform_2, window_bounds = array<i64: 4, 32, 32>}, {pipeline_mode = #tpu.pipeline_mode<synchronous>, transform_indices = @transform_3, window_bounds = array<i64: 32, 32>}, {pipeline_mode = #tpu.pipeline_mode<synchronous>, transform_indices = @transform_4, window_bounds = array<i64: 32, 2>}, {transform_indices = @transform_5, window_bounds = array<i64: 2, 32, 256>}]} {
    %c0 = arith.constant 0 : index
    %c0_0 = arith.constant 0 : index
    %c0_1 = arith.constant 0 : index
    %0 = vector.load %arg3[%c0, %c0_0, %c0_1] : memref<4x32x32xf32, #tpu.memory_space<vmem>>, vector<1x32x32xf32>
    %1 = vector.shape_cast %0 : vector<1x32x32xf32> to vector<32x32xf32>
    %c1 = arith.constant 1 : index
    %c0_2 = arith.constant 0 : index
    %c0_3 = arith.constant 0 : index
    %2 = vector.load %arg3[%c1, %c0_2, %c0_3] : memref<4x32x32xf32, #tpu.memory_space<vmem>>, vector<1x32x32xf32>
    %3 = vector.shape_cast %2 : vector<1x32x32xf32> to vector<32x32xf32>
    %c2 = arith.constant 2 : index
    %c0_4 = arith.constant 0 : index
    %c0_5 = arith.constant 0 : index
    %4 = vector.load %arg3[%c2, %c0_4, %c0_5] : memref<4x32x32xf32, #tpu.memory_space<vmem>>, vector<1x32x32xf32>
    %5 = vector.shape_cast %4 : vector<1x32x32xf32> to vector<32x32xf32>
    %c3 = arith.constant 3 : index
    %c0_6 = arith.constant 0 : index
    %c0_7 = arith.constant 0 : index
    %6 = vector.load %arg3[%c3, %c0_6, %c0_7] : memref<4x32x32xf32, #tpu.memory_space<vmem>>, vector<1x32x32xf32>
    %7 = vector.shape_cast %6 : vector<1x32x32xf32> to vector<32x32xf32>
    %c0_8 = arith.constant 0 : index
    %c0_9 = arith.constant 0 : index
    %8 = vector.load %arg4[%c0_8, %c0_9] : memref<32x32xf32, #tpu.memory_space<vmem>>, vector<32x32xf32>
    %c0_10 = arith.constant 0 : index
    %c0_11 = arith.constant 0 : index
    %9 = vector.load %arg5[%c0_10, %c0_11] : memref<32x2xf32, #tpu.memory_space<vmem>>, vector<32x1xf32>
    %c0_12 = arith.constant 0 : index
    %c1_13 = arith.constant 1 : index
    %10 = vector.load %arg5[%c0_12, %c1_13] : memref<32x2xf32, #tpu.memory_space<vmem>>, vector<32x1xf32>
    %c0_14 = arith.constant 0 : index
    %c0_15 = arith.constant 0 : index
    %c0_16 = arith.constant 0 : index
    %11 = vector.load %arg1[%c0_14, %c0_15, %c0_16] : memref<2x32x256xf32, #tpu.memory_space<vmem>>, vector<1x32x256xf32>
    %12 = vector.shape_cast %11 : vector<1x32x256xf32> to vector<32x256xf32>
    %c0_17 = arith.constant 0 : index
    %c0_18 = arith.constant 0 : index
    %c0_19 = arith.constant 0 : index
    %13 = vector.load %arg2[%c0_17, %c0_18, %c0_19] : memref<2x32x256xf32, #tpu.memory_space<vmem>>, vector<1x32x256xf32>
    %14 = vector.shape_cast %13 : vector<1x32x256xf32> to vector<32x256xf32>
    %cst = arith.constant dense<0.000000e+00> : vector<32xf32>
    %15 = vector.multi_reduction <add>, %12, %cst [1] : vector<32x256xf32> to vector<32xf32>
    %16 = vector.shape_cast %15 : vector<32xf32> to vector<32x1xf32>
    %cst_20 = arith.constant 3.906250e-03 : f32
    %17 = vector.broadcast %cst_20 : f32 to vector<32x1xf32>
    %18 = arith.mulf %16, %17 : vector<32x1xf32>
    %19 = vector.broadcast %18 : vector<32x1xf32> to vector<32x256xf32>
    %20 = arith.subf %12, %19 : vector<32x256xf32>
    %21 = arith.mulf %20, %20 : vector<32x256xf32>
    %cst_21 = arith.constant dense<0.000000e+00> : vector<32xf32>
    %22 = vector.multi_reduction <add>, %21, %cst_21 [1] : vector<32x256xf32> to vector<32xf32>
    %23 = vector.shape_cast %22 : vector<32xf32> to vector<32x1xf32>
    %cst_22 = arith.constant 0.00392156886 : f32
    %24 = vector.broadcast %cst_22 : f32 to vector<32x1xf32>
    %25 = arith.mulf %23, %24 : vector<32x1xf32>
    %cst_23 = arith.constant 9.99999974E-6 : f32
    %26 = vector.broadcast %cst_23 : f32 to vector<32x1xf32>
    %27 = arith.addf %25, %26 : vector<32x1xf32>
    %28 = math.rsqrt %27 : vector<32x1xf32>
    %29 = vector.broadcast %28 : vector<32x1xf32> to vector<32x256xf32>
    %30 = arith.mulf %20, %29 : vector<32x256xf32>
    %cst_24 = arith.constant dense<0.000000e+00> : vector<32xf32>
    %31 = vector.multi_reduction <add>, %14, %cst_24 [1] : vector<32x256xf32> to vector<32xf32>
    %32 = vector.shape_cast %31 : vector<32xf32> to vector<32x1xf32>
    %cst_25 = arith.constant 3.906250e-03 : f32
    %33 = vector.broadcast %cst_25 : f32 to vector<32x1xf32>
    %34 = arith.mulf %32, %33 : vector<32x1xf32>
    %35 = vector.broadcast %34 : vector<32x1xf32> to vector<32x256xf32>
    %36 = arith.subf %14, %35 : vector<32x256xf32>
    %37 = arith.mulf %36, %36 : vector<32x256xf32>
    %cst_26 = arith.constant dense<0.000000e+00> : vector<32xf32>
    %38 = vector.multi_reduction <add>, %37, %cst_26 [1] : vector<32x256xf32> to vector<32xf32>
    %39 = vector.shape_cast %38 : vector<32xf32> to vector<32x1xf32>
    %cst_27 = arith.constant 0.00392156886 : f32
    %40 = vector.broadcast %cst_27 : f32 to vector<32x1xf32>
    %41 = arith.mulf %39, %40 : vector<32x1xf32>
    %cst_28 = arith.constant 9.99999974E-6 : f32
    %42 = vector.broadcast %cst_28 : f32 to vector<32x1xf32>
    %43 = arith.addf %41, %42 : vector<32x1xf32>
    %44 = math.rsqrt %43 : vector<32x1xf32>
    %45 = vector.broadcast %44 : vector<32x1xf32> to vector<32x256xf32>
    %46 = arith.mulf %36, %45 : vector<32x256xf32>
    %cst_29 = arith.constant dense<0.000000e+00> : vector<32x32xf32>
    %47 = tpu.matmul %30, %46, %cst_29 {dimension_numbers = #tpu.dot_dimension_numbers<[1], [1], [0], [0], [0, 0, 1, 0], [], []>} : vector<32x256xf32>, vector<32x256xf32>, vector<32x32xf32> -> vector<32x32xf32>
    %cst_30 = arith.constant dense<0.000000e+00> : vector<32x32xf32>
    %48 = tpu.matmul %47, %3, %cst_30 {dimension_numbers = #tpu.dot_dimension_numbers<[1], [1], [0], [0], [0, 0, 1, 0], [], []>} : vector<32x32xf32>, vector<32x32xf32>, vector<32x32xf32> -> vector<32x32xf32>
    %cst_31 = arith.constant dense<0.000000e+00> : vector<32x32xf32>
    %49 = tpu.matmul %1, %48, %cst_31 {dimension_numbers = #tpu.dot_dimension_numbers<[1], [0], [0], [1], [0, 0, 1, 1], [], []>} : vector<32x32xf32>, vector<32x32xf32>, vector<32x32xf32> -> vector<32x32xf32>
    %50 = arith.addf %49, %8 : vector<32x32xf32>
    %cst_32 = arith.constant dense<0xFF800000> : vector<32xf32>
    %51 = vector.multi_reduction <maximumf>, %50, %cst_32 [1] : vector<32x32xf32> to vector<32xf32>
    %52 = vector.shape_cast %51 : vector<32xf32> to vector<32x1xf32>
    %53 = vector.broadcast %52 : vector<32x1xf32> to vector<32x32xf32>
    %54 = arith.subf %50, %53 : vector<32x32xf32>
    %55 = math.exp %54 : vector<32x32xf32>
    %cst_33 = arith.constant dense<0.000000e+00> : vector<32xf32>
    %56 = vector.multi_reduction <add>, %55, %cst_33 [1] : vector<32x32xf32> to vector<32xf32>
    %57 = vector.shape_cast %56 : vector<32xf32> to vector<32x1xf32>
    %58 = tpu.reciprocal %57 {approx = true} : vector<32x1xf32> -> vector<32x1xf32>
    %59 = vector.broadcast %58 : vector<32x1xf32> to vector<32x32xf32>
    %60 = arith.mulf %55, %59 : vector<32x32xf32>
    %cst_34 = arith.constant dense<0.000000e+00> : vector<32x32xf32>
    %61 = tpu.matmul %60, %5, %cst_34 {dimension_numbers = #tpu.dot_dimension_numbers<[1], [0], [0], [1], [0, 0, 1, 1], [], []>} : vector<32x32xf32>, vector<32x32xf32>, vector<32x32xf32> -> vector<32x32xf32>
    %cst_35 = arith.constant dense<0.000000e+00> : vector<32x32xf32>
    %62 = tpu.matmul %7, %61, %cst_35 {dimension_numbers = #tpu.dot_dimension_numbers<[1], [0], [0], [1], [0, 0, 1, 1], [], []>} : vector<32x32xf32>, vector<32x32xf32>, vector<32x32xf32> -> vector<32x32xf32>
    %cst_36 = arith.constant dense<0.000000e+00> : vector<32x1xf32>
    %63 = tpu.matmul %60, %9, %cst_36 {dimension_numbers = #tpu.dot_dimension_numbers<[1], [0], [0], [1], [0, 0, 1, 1], [], []>} : vector<32x32xf32>, vector<32x1xf32>, vector<32x1xf32> -> vector<32x1xf32>
    %cst_37 = arith.constant dense<0.000000e+00> : vector<32x1xf32>
    %64 = tpu.matmul %7, %63, %cst_37 {dimension_numbers = #tpu.dot_dimension_numbers<[1], [0], [0], [1], [0, 0, 1, 1], [], []>} : vector<32x32xf32>, vector<32x1xf32>, vector<32x1xf32> -> vector<32x1xf32>
    %65 = arith.addf %64, %10 : vector<32x1xf32>
    %cst_38 = arith.constant dense<0.000000e+00> : vector<32x256xf32>
    %66 = tpu.matmul %62, %14, %cst_38 {dimension_numbers = #tpu.dot_dimension_numbers<[1], [0], [0], [1], [0, 0, 1, 1], [], []>} : vector<32x32xf32>, vector<32x256xf32>, vector<32x256xf32> -> vector<32x256xf32>
    %67 = vector.broadcast %65 : vector<32x1xf32> to vector<32x256xf32>
    %68 = arith.addf %66, %67 : vector<32x256xf32>
    %69 = arith.addf %68, %12 : vector<32x256xf32>
    %c0_39 = arith.constant 0 : index
    %c0_40 = arith.constant 0 : index
    %c0_41 = arith.constant 0 : index
    %70 = vector.load %arg6[%c0_39, %c0_40, %c0_41] : memref<2x32x256xf32, #tpu.memory_space<vmem>>, vector<1x32x256xf32>
    %71 = vector.shape_cast %70 : vector<1x32x256xf32> to vector<32x256xf32>
    %72 = vector.shape_cast %69 : vector<32x256xf32> to vector<1x32x256xf32>
    tpu.vector_store %arg6[%c0_39, %c0_40, %c0_41], %72 {strides = array<i32>} : memref<2x32x256xf32, #tpu.memory_space<vmem>>, vector<1x32x256xf32>,
    %c1_42 = arith.constant 1 : index
    %c0_43 = arith.constant 0 : index
    %c0_44 = arith.constant 0 : index
    %73 = vector.load %arg1[%c1_42, %c0_43, %c0_44] : memref<2x32x256xf32, #tpu.memory_space<vmem>>, vector<1x32x256xf32>
    %74 = vector.shape_cast %73 : vector<1x32x256xf32> to vector<32x256xf32>
    %c1_45 = arith.constant 1 : index
    %c0_46 = arith.constant 0 : index
    %c0_47 = arith.constant 0 : index
    %75 = vector.load %arg2[%c1_45, %c0_46, %c0_47] : memref<2x32x256xf32, #tpu.memory_space<vmem>>, vector<1x32x256xf32>
    %76 = vector.shape_cast %75 : vector<1x32x256xf32> to vector<32x256xf32>
    %cst_48 = arith.constant dense<0.000000e+00> : vector<32xf32>
    %77 = vector.multi_reduction <add>, %74, %cst_48 [1] : vector<32x256xf32> to vector<32xf32>
    %78 = vector.shape_cast %77 : vector<32xf32> to vector<32x1xf32>
    %cst_49 = arith.constant 3.906250e-03 : f32
    %79 = vector.broadcast %cst_49 : f32 to vector<32x1xf32>
    %80 = arith.mulf %78, %79 : vector<32x1xf32>
    %81 = vector.broadcast %80 : vector<32x1xf32> to vector<32x256xf32>
    %82 = arith.subf %74, %81 : vector<32x256xf32>
    %83 = arith.mulf %82, %82 : vector<32x256xf32>
    %cst_50 = arith.constant dense<0.000000e+00> : vector<32xf32>
    %84 = vector.multi_reduction <add>, %83, %cst_50 [1] : vector<32x256xf32> to vector<32xf32>
    %85 = vector.shape_cast %84 : vector<32xf32> to vector<32x1xf32>
    %cst_51 = arith.constant 0.00392156886 : f32
    %86 = vector.broadcast %cst_51 : f32 to vector<32x1xf32>
    %87 = arith.mulf %85, %86 : vector<32x1xf32>
    %cst_52 = arith.constant 9.99999974E-6 : f32
    %88 = vector.broadcast %cst_52 : f32 to vector<32x1xf32>
    %89 = arith.addf %87, %88 : vector<32x1xf32>
    %90 = math.rsqrt %89 : vector<32x1xf32>
    %91 = vector.broadcast %90 : vector<32x1xf32> to vector<32x256xf32>
    %92 = arith.mulf %82, %91 : vector<32x256xf32>
    %cst_53 = arith.constant dense<0.000000e+00> : vector<32xf32>
    %93 = vector.multi_reduction <add>, %76, %cst_53 [1] : vector<32x256xf32> to vector<32xf32>
    %94 = vector.shape_cast %93 : vector<32xf32> to vector<32x1xf32>
    %cst_54 = arith.constant 3.906250e-03 : f32
    %95 = vector.broadcast %cst_54 : f32 to vector<32x1xf32>
    %96 = arith.mulf %94, %95 : vector<32x1xf32>
    %97 = vector.broadcast %96 : vector<32x1xf32> to vector<32x256xf32>
    %98 = arith.subf %76, %97 : vector<32x256xf32>
    %99 = arith.mulf %98, %98 : vector<32x256xf32>
    %cst_55 = arith.constant dense<0.000000e+00> : vector<32xf32>
    %100 = vector.multi_reduction <add>, %99, %cst_55 [1] : vector<32x256xf32> to vector<32xf32>
    %101 = vector.shape_cast %100 : vector<32xf32> to vector<32x1xf32>
    %cst_56 = arith.constant 0.00392156886 : f32
    %102 = vector.broadcast %cst_56 : f32 to vector<32x1xf32>
    %103 = arith.mulf %101, %102 : vector<32x1xf32>
    %cst_57 = arith.constant 9.99999974E-6 : f32
    %104 = vector.broadcast %cst_57 : f32 to vector<32x1xf32>
    %105 = arith.addf %103, %104 : vector<32x1xf32>
    %106 = math.rsqrt %105 : vector<32x1xf32>
    %107 = vector.broadcast %106 : vector<32x1xf32> to vector<32x256xf32>
    %108 = arith.mulf %98, %107 : vector<32x256xf32>
    %cst_58 = arith.constant dense<0.000000e+00> : vector<32x32xf32>
    %109 = tpu.matmul %92, %108, %cst_58 {dimension_numbers = #tpu.dot_dimension_numbers<[1], [1], [0], [0], [0, 0, 1, 0], [], []>} : vector<32x256xf32>, vector<32x256xf32>, vector<32x32xf32> -> vector<32x32xf32>
    %cst_59 = arith.constant dense<0.000000e+00> : vector<32x32xf32>
    %110 = tpu.matmul %109, %3, %cst_59 {dimension_numbers = #tpu.dot_dimension_numbers<[1], [1], [0], [0], [0, 0, 1, 0], [], []>} : vector<32x32xf32>, vector<32x32xf32>, vector<32x32xf32> -> vector<32x32xf32>
    %cst_60 = arith.constant dense<0.000000e+00> : vector<32x32xf32>
    %111 = tpu.matmul %1, %110, %cst_60 {dimension_numbers = #tpu.dot_dimension_numbers<[1], [0], [0], [1], [0, 0, 1, 1], [], []>} : vector<32x32xf32>, vector<32x32xf32>, vector<32x32xf32> -> vector<32x32xf32>
    %112 = arith.addf %111, %8 : vector<32x32xf32>
    %cst_61 = arith.constant dense<0xFF800000> : vector<32xf32>
    %113 = vector.multi_reduction <maximumf>, %112, %cst_61 [1] : vector<32x32xf32> to vector<32xf32>
    %114 = vector.shape_cast %113 : vector<32xf32> to vector<32x1xf32>
    %115 = vector.broadcast %114 : vector<32x1xf32> to vector<32x32xf32>
    %116 = arith.subf %112, %115 : vector<32x32xf32>
    %117 = math.exp %116 : vector<32x32xf32>
    %cst_62 = arith.constant dense<0.000000e+00> : vector<32xf32>
    %118 = vector.multi_reduction <add>, %117, %cst_62 [1] : vector<32x32xf32> to vector<32xf32>
    %119 = vector.shape_cast %118 : vector<32xf32> to vector<32x1xf32>
    %120 = tpu.reciprocal %119 {approx = true} : vector<32x1xf32> -> vector<32x1xf32>
    %121 = vector.broadcast %120 : vector<32x1xf32> to vector<32x32xf32>
    %122 = arith.mulf %117, %121 : vector<32x32xf32>
    %cst_63 = arith.constant dense<0.000000e+00> : vector<32x32xf32>
    %123 = tpu.matmul %122, %5, %cst_63 {dimension_numbers = #tpu.dot_dimension_numbers<[1], [0], [0], [1], [0, 0, 1, 1], [], []>} : vector<32x32xf32>, vector<32x32xf32>, vector<32x32xf32> -> vector<32x32xf32>
    %cst_64 = arith.constant dense<0.000000e+00> : vector<32x32xf32>
    %124 = tpu.matmul %7, %123, %cst_64 {dimension_numbers = #tpu.dot_dimension_numbers<[1], [0], [0], [1], [0, 0, 1, 1], [], []>} : vector<32x32xf32>, vector<32x32xf32>, vector<32x32xf32> -> vector<32x32xf32>
    %cst_65 = arith.constant dense<0.000000e+00> : vector<32x1xf32>
    %125 = tpu.matmul %122, %9, %cst_65 {dimension_numbers = #tpu.dot_dimension_numbers<[1], [0], [0], [1], [0, 0, 1, 1], [], []>} : vector<32x32xf32>, vector<32x1xf32>, vector<32x1xf32> -> vector<32x1xf32>
    %cst_66 = arith.constant dense<0.000000e+00> : vector<32x1xf32>
    %126 = tpu.matmul %7, %125, %cst_66 {dimension_numbers = #tpu.dot_dimension_numbers<[1], [0], [0], [1], [0, 0, 1, 1], [], []>} : vector<32x32xf32>, vector<32x1xf32>, vector<32x1xf32> -> vector<32x1xf32>
    %127 = arith.addf %126, %10 : vector<32x1xf32>
    %cst_67 = arith.constant dense<0.000000e+00> : vector<32x256xf32>
    %128 = tpu.matmul %124, %76, %cst_67 {dimension_numbers = #tpu.dot_dimension_numbers<[1], [0], [0], [1], [0, 0, 1, 1], [], []>} : vector<32x32xf32>, vector<32x256xf32>, vector<32x256xf32> -> vector<32x256xf32>
    %129 = vector.broadcast %127 : vector<32x1xf32> to vector<32x256xf32>
    %130 = arith.addf %128, %129 : vector<32x256xf32>
    %131 = arith.addf %130, %74 : vector<32x256xf32>
    %c1_68 = arith.constant 1 : index
    %c0_69 = arith.constant 0 : index
    %c0_70 = arith.constant 0 : index
    %132 = vector.load %arg6[%c1_68, %c0_69, %c0_70] : memref<2x32x256xf32, #tpu.memory_space<vmem>>, vector<1x32x256xf32>
    %133 = vector.shape_cast %132 : vector<1x32x256xf32> to vector<32x256xf32>
    %134 = vector.shape_cast %131 : vector<32x256xf32> to vector<1x32x256xf32>
    tpu.vector_store %arg6[%c1_68, %c0_69, %c0_70], %134 {strides = array<i32>} : memref<2x32x256xf32, #tpu.memory_space<vmem>>, vector<1x32x256xf32>,
    return
  }
  func.func @transform_0(%arg0: i32) -> (i32, i32, i32) {
    %c0_i32 = arith.constant 0 : i32
    %c0_i32_0 = arith.constant 0 : i32
    %c0_i32_1 = arith.constant 0 : i32
    return %arg0, %c0_i32, %c0_i32_0 : i32, i32, i32
  }
  func.func @transform_1(%arg0: i32) -> (i32, i32, i32) {
    %c0_i32 = arith.constant 0 : i32
    %c0_i32_0 = arith.constant 0 : i32
    %c0_i32_1 = arith.constant 0 : i32
    return %arg0, %c0_i32, %c0_i32_0 : i32, i32, i32
  }
  func.func @transform_2(%arg0: i32) -> (i32, i32, i32) {
    %c0_i32 = arith.constant 0 : i32
    %c0_i32_0 = arith.constant 0 : i32
    %c0_i32_1 = arith.constant 0 : i32
    %c0_i32_2 = arith.constant 0 : i32
    return %c0_i32, %c0_i32_0, %c0_i32_1 : i32, i32, i32
  }
  func.func @transform_3(%arg0: i32) -> (i32, i32) {
    %c0_i32 = arith.constant 0 : i32
    %c0_i32_0 = arith.constant 0 : i32
    %c0_i32_1 = arith.constant 0 : i32
    return %c0_i32, %c0_i32_0 : i32, i32
  }
  func.func @transform_4(%arg0: i32) -> (i32, i32) {
    %c0_i32 = arith.constant 0 : i32
    %c0_i32_0 = arith.constant 0 : i32
    %c0_i32_1 = arith.constant 0 : i32
    return %c0_i32, %c0_i32_0 : i32, i32
  }
  func.func @transform_5(%arg0: i32) -> (i32, i32, i32) {
    %c0_i32 = arith.constant 0 : i32
    %c0_i32_0 = arith.constant 0 : i32
    %c0_i32_1 = arith.constant 0 : i32
    return %arg0, %c0_i32, %c0_i32_0 : i32, i32, i32
  }
}

</mosaic_0001>

<llo_original>
// kernel: tpu_custom_call.1
$region0: #{tpu_custom_call.1}
  #allocation0 [shape = 'u32[]', space=smem, size = 0x4, offset = 0x4, fixed_abs, tag = 'smem constant byte address 0x4 - core index']
  #allocation1 [shape = 'u32[144,128]{1,0:T(1,128)}', space=vmem, size = 0x12000, scoped, tag = 'internal scratch']
  %s0 = inlined_call_operand.hbm [shape: f32[2,32,256], index: 0, kind: input, shape index: {}]
  %s1 = inlined_call_operand.hbm [shape: f32[2,32,256], index: 1, kind: input, shape index: {}]
  %s2 = inlined_call_operand.hbm [shape: f32[4,32,32], index: 2, kind: input, shape index: {}]
  %s3 = inlined_call_operand.vmem [shape: f32[32,32], index: 3, kind: input, shape index: {}]
  %s4 = inlined_call_operand.vmem [shape: f32[32,2], index: 4, kind: input, shape index: {}]
  %s5 = inlined_call_operand.hbm [shape: f32[2,32,256], index: 5, kind: output, shape index: {}]
  %s6 = sld [smem:[#allocation0]]
  $region42: #{tpu_custom_call.1} parent=0
    _
  %s8 = ssub.s32 1, %s6
  %s9 = scalar_select 0, %s8, %s6
  $region1: #{tpu_custom_call.1} parent=0
    #allocation2 [shape = 'u8[65536]{0}', space=vmem, size = 0x10000, scoped, tag = 'input window, operand 0, single buffered']
    #allocation3 [shape = 's32[1]{0}', space=sflag, size = 0x4, scoped, tag = 'scoped memory for tpu_custom_call.1']
    #allocation4 [shape = 's32[1]{0}', space=sflag, size = 0x4, scoped, tag = 'scoped memory for tpu_custom_call.1']
    #allocation5 [shape = 'u8[65536]{0}', space=vmem, size = 0x10000, scoped, tag = 'input window, operand 1, single buffered']
    #allocation6 [shape = 's32[1]{0}', space=sflag, size = 0x4, scoped, tag = 'scoped memory for tpu_custom_call.1']
    #allocation7 [shape = 'u8[65536]{0}', space=vmem, size = 0x10000, scoped, tag = 'input window, operand 2, single buffered']
    #allocation8 [shape = 'u8[65536]{0}', space=vmem, size = 0x10000, scoped, tag = 'output window, operand 0, single buffered']
    %10 = vsyncpa [#allocation3], 0
    %11 = vsyncpa [#allocation6], 0
    %12 = vsyncpa [#allocation4], 0
    // Predicated region
    $region2: #{tpu_custom_call.1} parent=1 // pred_check
      _
    $region3: #{tpu_custom_call.1} parent=1 // pred_check_branch
      %14 = sbr.rel (0) target = $region5
    $region4: #{tpu_custom_call.1} parent=1 // pred_region
      %s16 = ssub.s32 2048, 2048
      %17 = vsyncadd [#allocation3], %s16
      %s18 = sshll.u32 [#allocation2], 4
      %s19 = int_to_ptr.vmem [resolvable:$true] %s18
      %24 = dma.hbm_to_vmem [thread:$0]  %s0, 2048, %s19, [#allocation3], 256, 256, 16
    $region5: #{tpu_custom_call.1} parent=1 // pred_fallthru
      _
    // Predicated region
    $region6: #{tpu_custom_call.1} parent=1 // pred_check
      _
    $region7: #{tpu_custom_call.1} parent=1 // pred_check_branch
      %26 = sbr.rel (0) target = $region9
    $region8: #{tpu_custom_call.1} parent=1 // pred_region
      %s28 = ssub.s32 2048, 2048
      %29 = vsyncadd [#allocation6], %s28
      %s30 = sshll.u32 [#allocation5], 4
      %s31 = int_to_ptr.vmem [resolvable:$true] %s30
      %36 = dma.hbm_to_vmem [thread:$0]  %s1, 2048, %s31, [#allocation6], 256, 256, 16
    $region9: #{tpu_custom_call.1} parent=1 // pred_fallthru
      _
    // Predicated region
    $region10: #{tpu_custom_call.1} parent=1 // pred_check
      _
    $region11: #{tpu_custom_call.1} parent=1 // pred_check_branch
      %38 = sbr.rel (0) target = $region13
    $region12: #{tpu_custom_call.1} parent=1 // pred_region
      %s40 = ssub.s32 2048, 2048
      %41 = vsyncadd [#allocation6], %s40
      %s42 = sshll.u32 [#allocation7], 4
      %s43 = int_to_ptr.vmem [resolvable:$true] %s42
      %48 = dma.hbm_to_vmem [thread:$0]  %s2, 2048, %s43, [#allocation6], 128, 128, 8
    $region13: #{tpu_custom_call.1} parent=1 // pred_fallthru
      _
    // Predicated region
    $region14: #{tpu_custom_call.1} parent=1 // pred_check
      _
    $region15: #{tpu_custom_call.1} parent=1 // pred_check_branch
      %50 = sbr.rel (0) target = $region17
    $region16: #{tpu_custom_call.1} parent=1 // pred_region
      _
    $region17: #{tpu_custom_call.1} parent=1 // pred_fallthru
      _
    // Predicated region
    $region18: #{tpu_custom_call.1} parent=1 // pred_check
      _
    $region19: #{tpu_custom_call.1} parent=1 // pred_check_branch
      %52 = sbr.rel (0) target = $region21
    $region20: #{tpu_custom_call.1} parent=1 // pred_region
      _
    $region21: #{tpu_custom_call.1} parent=1 // pred_fallthru
      _
    // Predicated region
    $region22: #{tpu_custom_call.1} parent=1 // pred_check
      _
    $region23: #{tpu_custom_call.1} parent=1 // pred_check_branch
      %54 = sbr.rel (0) target = $region25
    $region24: #{tpu_custom_call.1} parent=1 // pred_region
      %55 = dma.done [#allocation3], 2048
    $region25: #{tpu_custom_call.1} parent=1 // pred_fallthru
      _
    // Predicated region
    $region26: #{tpu_custom_call.1} parent=1 // pred_check
      _
    $region27: #{tpu_custom_call.1} parent=1 // pred_check_branch
      %57 = sbr.rel (0) target = $region29
    $region28: #{tpu_custom_call.1} parent=1 // pred_region
      %58 = dma.done [#allocation6], 2048
    $region29: #{tpu_custom_call.1} parent=1 // pred_fallthru
      _
    // Predicated region
    $region30: #{tpu_custom_call.1} parent=1 // pred_check
      _
    $region31: #{tpu_custom_call.1} parent=1 // pred_check_branch
      %60 = sbr.rel (0) target = $region33
    $region32: #{tpu_custom_call.1} parent=1 // pred_region
      %61 = dma.done [#allocation6], 2048
    $region33: #{tpu_custom_call.1} parent=1 // pred_fallthru
      _
    %v62 = vld [vmem:[#allocation7] sm:$0xff]
    %v63 = vld [vmem:[#allocation7 + $0x8] sm:$0xff]
    %v64 = vld [vmem:[#allocation7 + $0x10] sm:$0xff]
    %v65 = vld [vmem:[#allocation7 + $0x18] sm:$0xff]
    %s66 = scalar_lea.vmem [#allocation7], 32
    %v67 = vld [vmem:[%s66] sm:$0xff]
    %v68 = vld [vmem:[%s66 + $0x8] sm:$0xff]
    %v69 = vld [vmem:[%s66 + $0x10] sm:$0xff]
    %v70 = vld [vmem:[%s66 + $0x18] sm:$0xff]
    %s71 = scalar_lea.vmem [#allocation7], 64
    %v72 = vld [vmem:[%s71] sm:$0xff]
    %v73 = vld [vmem:[%s71 + $0x8] sm:$0xff]
    %v74 = vld [vmem:[%s71 + $0x10] sm:$0xff]
    %v75 = vld [vmem:[%s71 + $0x18] sm:$0xff]
    %s76 = scalar_lea.vmem [#allocation7], 96
    %v77 = vld [vmem:[%s76] sm:$0xff]
    %v78 = vld [vmem:[%s76 + $0x8] sm:$0xff]
    %v79 = vld [vmem:[%s76 + $0x10] sm:$0xff]
    %v80 = vld [vmem:[%s76 + $0x18] sm:$0xff]
    %v81 = vld [vmem:[%s3] sm:$0xff]
    %v82 = vld [vmem:[%s3 + $0x8] sm:$0xff]
    %v83 = vld [vmem:[%s3 + $0x10] sm:$0xff]
    %v84 = vld [vmem:[%s3 + $0x18] sm:$0xff]
    %v85 = vld [vmem:[%s4] sm:$0xff]
    %v86 = vld [vmem:[%s4 + $0x8] sm:$0xff]
    %v87 = vld [vmem:[%s4 + $0x10] sm:$0xff]
    %v88 = vld [vmem:[%s4 + $0x18] sm:$0xff]
    %v89 = vld [vmem:[#allocation2] sm:$0xff]
    %v90 = vld [vmem:[#allocation2 + $0x8] sm:$0xff]
    %v91 = vld [vmem:[#allocation2 + $0x10] sm:$0xff]
    %v92 = vld [vmem:[#allocation2 + $0x18] sm:$0xff]
    %v93 = vld [vmem:[#allocation2 + $0x20] sm:$0xff]
    %v94 = vld [vmem:[#allocation2 + $0x28] sm:$0xff]
    %v95 = vld [vmem:[#allocation2 + $0x30] sm:$0xff]
    %v96 = vld [vmem:[#allocation2 + $0x38] sm:$0xff]
    %v97 = vld [vmem:[#allocation5] sm:$0xff]
    %v98 = vld [vmem:[#allocation5 + $0x8] sm:$0xff]
    %v99 = vld [vmem:[#allocation5 + $0x10] sm:$0xff]
    %v100 = vld [vmem:[#allocation5 + $0x18] sm:$0xff]
    %v101 = vld [vmem:[#allocation5 + $0x20] sm:$0xff]
    %v102 = vld [vmem:[#allocation5 + $0x28] sm:$0xff]
    %v103 = vld [vmem:[#allocation5 + $0x30] sm:$0xff]
    %v104 = vld [vmem:[#allocation5 + $0x38] sm:$0xff]
    %v105 = vadd.f32 %v89, %v90
    %106 = vadd.xlane.f32.xlu0 %v105
    %v107 = vpop.xlane.xlu0 %106
    %v108 = vadd.f32 %v91, %v92
    %109 = vadd.xlane.f32.xlu0 %v108
    %v110 = vpop.xlane.xlu0 %109
    %v111 = vadd.f32 %v93, %v94
    %112 = vadd.xlane.f32.xlu0 %v111
    %v113 = vpop.xlane.xlu0 %112
    %v114 = vadd.f32 %v95, %v96
    %115 = vadd.xlane.f32.xlu0 %v114
    %v116 = vpop.xlane.xlu0 %115
    %v117 = vmul.f32 %v107, 0.00390625
    %v118 = vmul.f32 %v110, 0.00390625
    %v119 = vmul.f32 %v113, 0.00390625
    %v120 = vmul.f32 %v116, 0.00390625
    %v121 = vsub.f32 %v89, %v117
    %v122 = vsub.f32 %v90, %v117
    %v123 = vsub.f32 %v91, %v118
    %v124 = vsub.f32 %v92, %v118
    %v125 = vsub.f32 %v93, %v119
    %v126 = vsub.f32 %v94, %v119
    %v127 = vsub.f32 %v95, %v120
    %v128 = vsub.f32 %v96, %v120
    %v129 = vmul.f32 %v121, %v121
    %v130 = vmul.f32 %v122, %v122
    %v131 = vmul.f32 %v123, %v123
    %v132 = vmul.f32 %v124, %v124
    %v133 = vmul.f32 %v125, %v125
    %v134 = vmul.f32 %v126, %v126
    %v135 = vmul.f32 %v127, %v127
    %v136 = vmul.f32 %v128, %v128
    %v137 = vadd.f32 %v129, %v130
    %138 = vadd.xlane.f32.xlu0 %v137
    %v139 = vpop.xlane.xlu0 %138
    %v140 = vadd.f32 %v131, %v132
    %141 = vadd.xlane.f32.xlu0 %v140
    %v142 = vpop.xlane.xlu0 %141
    %v143 = vadd.f32 %v133, %v134
    %144 = vadd.xlane.f32.xlu0 %v143
    %v145 = vpop.xlane.xlu0 %144
    %v146 = vadd.f32 %v135, %v136
    %147 = vadd.xlane.f32.xlu0 %v146
    %v148 = vpop.xlane.xlu0 %147
    %v149 = vmul.f32 %v139, 0.003921569
    %v150 = vmul.f32 %v142, 0.003921569
    %v151 = vmul.f32 %v145, 0.003921569
    %v152 = vmul.f32 %v148, 0.003921569
    %v153 = vadd.f32 %v149, 1e-05
    %v154 = vadd.f32 %v150, 1e-05
    %v155 = vadd.f32 %v151, 1e-05
    %v156 = vadd.f32 %v152, 1e-05
    %v157 = vrsqrt.pop %v153
    %v158 = vrsqrt.pop %v154
    %v159 = vrsqrt.pop %v155
    %v160 = vrsqrt.pop %v156
    %v161 = vmul.f32 %v121, %v157
    %v162 = vmul.f32 %v122, %v157
    %v163 = vmul.f32 %v123, %v158
    %v164 = vmul.f32 %v124, %v158
    %v165 = vmul.f32 %v125, %v159
    %v166 = vmul.f32 %v126, %v159
    %v167 = vmul.f32 %v127, %v160
    %v168 = vmul.f32 %v128, %v160
    %v169 = vadd.f32 %v97, %v98
    %170 = vadd.xlane.f32.xlu0 %v169
    %v171 = vpop.xlane.xlu0 %170
    %v172 = vadd.f32 %v99, %v100
    %173 = vadd.xlane.f32.xlu0 %v172
    %v174 = vpop.xlane.xlu0 %173
    %v175 = vadd.f32 %v101, %v102
    %176 = vadd.xlane.f32.xlu0 %v175
    %v177 = vpop.xlane.xlu0 %176
    %v178 = vadd.f32 %v103, %v104
    %179 = vadd.xlane.f32.xlu0 %v178
    %v180 = vpop.xlane.xlu0 %179
    %v181 = vmul.f32 %v171, 0.00390625
    %v182 = vmul.f32 %v174, 0.00390625
    %v183 = vmul.f32 %v177, 0.00390625
    %v184 = vmul.f32 %v180, 0.00390625
    %v185 = vsub.f32 %v97, %v181
    %v186 = vsub.f32 %v98, %v181
    %v187 = vsub.f32 %v99, %v182
    %v188 = vsub.f32 %v100, %v182
    %v189 = vsub.f32 %v101, %v183
    %v190 = vsub.f32 %v102, %v183
    %v191 = vsub.f32 %v103, %v184
    %v192 = vsub.f32 %v104, %v184
    %v193 = vmul.f32 %v185, %v185
    %v194 = vmul.f32 %v186, %v186
    %v195 = vmul.f32 %v187, %v187
    %v196 = vmul.f32 %v188, %v188
    %v197 = vmul.f32 %v189, %v189
    %v198 = vmul.f32 %v190, %v190
    %v199 = vmul.f32 %v191, %v191
    %v200 = vmul.f32 %v192, %v192
    %v201 = vadd.f32 %v193, %v194
    %202 = vadd.xlane.f32.xlu0 %v201
    %v203 = vpop.xlane.xlu0 %202
    %v204 = vadd.f32 %v195, %v196
    %205 = vadd.xlane.f32.xlu0 %v204
    %v206 = vpop.xlane.xlu0 %205
    %v207 = vadd.f32 %v197, %v198
    %208 = vadd.xlane.f32.xlu0 %v207
    %v209 = vpop.xlane.xlu0 %208
    %v210 = vadd.f32 %v199, %v200
    %211 = vadd.xlane.f32.xlu0 %v210
    %v212 = vpop.xlane.xlu0 %211
    %v213 = vmul.f32 %v203, 0.003921569
    %v214 = vmul.f32 %v206, 0.003921569
    %v215 = vmul.f32 %v209, 0.003921569
    %v216 = vmul.f32 %v212, 0.003921569
    %v217 = vadd.f32 %v213, 1e-05
    %v218 = vadd.f32 %v214, 1e-05
    %v219 = vadd.f32 %v215, 1e-05
    %v220 = vadd.f32 %v216, 1e-05
    %v221 = vrsqrt.pop %v217
    %v222 = vrsqrt.pop %v218
    %v223 = vrsqrt.pop %v219
    %v224 = vrsqrt.pop %v220
    %v225 = vmul.f32 %v185, %v221
    %v226 = vmul.f32 %v186, %v221
    %v227 = vmul.f32 %v187, %v222
    %v228 = vmul.f32 %v188, %v222
    %v229 = vmul.f32 %v189, %v223
    %v230 = vmul.f32 %v190, %v223
    %v231 = vmul.f32 %v191, %v224
    %v232 = vmul.f32 %v192, %v224
    %233 = vmatprep.subr.mxu0 0.0
    %234 = vmatpush1.xpose.msra.mxu0 0.0
    %235 = vmatprep.subr.mxu0 0.0
    %236 = vmatpush1.xpose.msra.mxu0 0.0
    %237 = vmatprep.subr.mxu0 0.0
    %238 = vmatpush1.xpose.msra.mxu0 0.0
    %239 = vmatprep.subr.mxu0 0.0
    %240 = vmatpush1.xpose.msra.mxu0 0.0
    %241 = vmatprep.subr.mxu0 0.0
    %242 = vmatpush1.xpose.msra.mxu0 0.0
    %243 = vmatprep.subr.mxu0 0.0
    %244 = vmatpush1.xpose.msra.mxu0 0.0
    %245 = vmatprep.subr.mxu0 0.0
    %246 = vmatpush1.xpose.msra.mxu0 0.0
    %247 = vmatprep.subr.mxu0 0.0
    %248 = vmatpush1.xpose.msra.mxu0 0.0
    %249 = vmatprep.subr.mxu0 0.0
    %250 = vmatpush1.xpose.msra.mxu0 0.0
    %251 = vmatprep.subr.mxu0 0.0
    %252 = vmatpush1.xpose.msra.mxu0 0.0
    %253 = vmatprep.subr.mxu0 0.0
    %254 = vmatpush1.xpose.msra.mxu0 0.0
    %255 = vmatprep.subr.mxu0 0.0
    %256 = vmatpush1.xpose.msra.mxu0 0.0
    %257 = vmatprep.subr.mxu0 %v232
    %258 = vmatpush1.xpose.msra.mxu0 %v231
    %259 = vmatprep.subr.mxu0 %v230
    %260 = vmatpush1.xpose.msra.mxu0 %v229
    %261 = vmatprep.subr.mxu0 %v228
    %262 = vmatpush1.xpose.msra.mxu0 %v227
    %263 = vmatprep.subr.mxu0 %v226
    %264 = vmatpush1.xpose.msra.mxu0 %v225
    %265 = vmatprep.subr.mxu0 0.0
    %266 = vmatpush2.xpose.msra.mxu0 0.0
    %267 = vmatprep.subr.mxu0 0.0
    %268 = vmatpush2.xpose.msra.mxu0 0.0
    %269 = vmatprep.subr.mxu0 0.0
    %270 = vmatpush2.xpose.msra.mxu0 0.0
    %271 = vmatprep.subr.mxu0 0.0
    %272 = vmatpush2.xpose.msra.mxu0 0.0
    %273 = vmatprep.subr.mxu0 0.0
    %274 = vmatpush2.xpose.msra.mxu0 0.0
    %275 = vmatprep.subr.mxu0 0.0
    %276 = vmatpush2.xpose.msra.mxu0 0.0
    %277 = vmatprep.subr.mxu0 0.0
    %278 = vmatpush2.xpose.msra.mxu0 0.0
    %279 = vmatprep.subr.mxu0 0.0
    %280 = vmatpush2.xpose.msra.mxu0 0.0
    %281 = vmatprep.subr.mxu0 0.0
    %282 = vmatpush2.xpose.msra.mxu0 0.0
    %283 = vmatprep.subr.mxu0 0.0
    %284 = vmatpush2.xpose.msra.mxu0 0.0
    %285 = vmatprep.subr.mxu0 0.0
    %286 = vmatpush2.xpose.msra.mxu0 0.0
    %287 = vmatprep.subr.mxu0 0.0
    %288 = vmatpush2.xpose.msra.mxu0 0.0
    %289 = vmatprep.subr.mxu0 0.0
    %290 = vmatpush2.xpose.msra.mxu0 0.0
    %291 = vmatprep.subr.mxu0 0.0
    %292 = vmatpush2.xpose.msra.mxu0 0.0
    %293 = vmatprep.subr.mxu0 0.0
    %294 = vmatpush2.xpose.msra.mxu0 0.0
    %295 = vmatprep.subr.mxu0 0.0
    %296 = vmatpush2.xpose.msra.mxu0 0.0
    %297 = vmatprep.mubr.f32.mxu0 %v162
    %298 = vmatmul.mubr.f32.gmra.mxu0 %v161
    %v299 = vpop.f32.mrf.mxu0
    %v300 = vadd.f32 0.0, %v299
    %v301 = vpop.f32.mrf.mxu0
    %302 = vmatprep.mubr.f32.mxu0 %v164
    %303 = vmatmul.mubr.f32.gmra.mxu0 %v163
    %v304 = vpop.f32.mrf.mxu0
    %v305 = vadd.f32 0.0, %v304
    %v306 = vpop.f32.mrf.mxu0
    %307 = vmatprep.mubr.f32.mxu0 %v166
    %308 = vmatmul.mubr.f32.gmra.mxu0 %v165
    %v309 = vpop.f32.mrf.mxu0
    %v310 = vadd.f32 0.0, %v309
    %v311 = vpop.f32.mrf.mxu0
    %312 = vmatprep.mubr.f32.mxu0 %v168
    %313 = vmatmul.mubr.f32.gmra.mxu0 %v167
    %v314 = vpop.f32.mrf.mxu0
    %v315 = vadd.f32 0.0, %v314
    %v316 = vpop.f32.mrf.mxu0
    %317 = vdwg.mxu0
    %vm318 = vcmask 261120
    %v320 = vsel %vm318, %v300, 0
    %v323 = vsel %vm318, %v305, 0
    %v326 = vsel %vm318, %v310, 0
    %v329 = vsel %vm318, %v315, 0
    %v332 = vsel %vm318, %v67, 0
    %v335 = vsel %vm318, %v68, 0
    %v338 = vsel %vm318, %v69, 0
    %v341 = vsel %vm318, %v70, 0
    %343 = vmatprep.subr.mxu0 0.0
    %344 = vmatpush1.xpose.msra.mxu0 0.0
    %345 = vmatprep.subr.mxu0 0.0
    %346 = vmatpush1.xpose.msra.mxu0 0.0
    %347 = vmatprep.subr.mxu0 0.0
    %348 = vmatpush1.xpose.msra.mxu0 0.0
    %349 = vmatprep.subr.mxu0 0.0
    %350 = vmatpush1.xpose.msra.mxu0 0.0
    %351 = vmatprep.subr.mxu0 0.0
    %352 = vmatpush1.xpose.msra.mxu0 0.0
    %353 = vmatprep.subr.mxu0 0.0
    %354 = vmatpush1.xpose.msra.mxu0 0.0
    %355 = vmatprep.subr.mxu0 0.0
    %356 = vmatpush1.xpose.msra.mxu0 0.0
    %357 = vmatprep.subr.mxu0 0.0
    %358 = vmatpush1.xpose.msra.mxu0 0.0
    %359 = vmatprep.subr.mxu0 0.0
    %360 = vmatpush1.xpose.msra.mxu0 0.0
    %361 = vmatprep.subr.mxu0 0.0
    %362 = vmatpush1.xpose.msra.mxu0 0.0
    %363 = vmatprep.subr.mxu0 0.0
    %364 = vmatpush1.xpose.msra.mxu0 0.0
    %365 = vmatprep.subr.mxu0 0.0
    %366 = vmatpush1.xpose.msra.mxu0 0.0
    %367 = vmatprep.subr.mxu0 0.0
    %368 = vmatpush1.xpose.msra.mxu0 %v341
    %369 = vmatprep.subr.mxu0 0.0
    %370 = vmatpush1.xpose.msra.mxu0 %v338
    %371 = vmatprep.subr.mxu0 0.0
    %372 = vmatpush1.xpose.msra.mxu0 %v335
    %373 = vmatprep.subr.mxu0 0.0
    %374 = vmatpush1.xpose.msra.mxu0 %v332
    %375 = vmatprep.subr.mxu0 0.0
    %376 = vmatpush2.xpose.msra.mxu0 0.0
    %377 = vmatprep.subr.mxu0 0.0
    %378 = vmatpush2.xpose.msra.mxu0 0.0
    %379 = vmatprep.subr.mxu0 0.0
    %380 = vmatpush2.xpose.msra.mxu0 0.0
    %381 = vmatprep.subr.mxu0 0.0
    %382 = vmatpush2.xpose.msra.mxu0 0.0
    %383 = vmatprep.subr.mxu0 0.0
    %384 = vmatpush2.xpose.msra.mxu0 0.0
    %385 = vmatprep.subr.mxu0 0.0
    %386 = vmatpush2.xpose.msra.mxu0 0.0
    %387 = vmatprep.subr.mxu0 0.0
    %388 = vmatpush2.xpose.msra.mxu0 0.0
    %389 = vmatprep.subr.mxu0 0.0
    %390 = vmatpush2.xpose.msra.mxu0 0.0
    %391 = vmatprep.subr.mxu0 0.0
    %392 = vmatpush2.xpose.msra.mxu0 0.0
    %393 = vmatprep.subr.mxu0 0.0
    %394 = vmatpush2.xpose.msra.mxu0 0.0
    %395 = vmatprep.subr.mxu0 0.0
    %396 = vmatpush2.xpose.msra.mxu0 0.0
    %397 = vmatprep.subr.mxu0 0.0
    %398 = vmatpush2.xpose.msra.mxu0 0.0
    %399 = vmatprep.subr.mxu0 0.0
    %400 = vmatpush2.xpose.msra.mxu0 0.0
    %401 = vmatprep.subr.mxu0 0.0
    %402 = vmatpush2.xpose.msra.mxu0 0.0
    %403 = vmatprep.subr.mxu0 0.0
    %404 = vmatpush2.xpose.msra.mxu0 0.0
    %405 = vmatprep.subr.mxu0 0.0
    %406 = vmatpush2.xpose.msra.mxu0 0.0
    %407 = vmatprep.mubr.f32.mxu0 0.0
    %408 = vmatmul.mubr.f32.gmra.mxu0 %v320
    %v409 = vpop.f32.mrf.mxu0
    %v410 = vadd.f32 0.0, %v409
    %v411 = vpop.f32.mrf.mxu0
    %412 = vmatprep.mubr.f32.mxu0 0.0
    %413 = vmatmul.mubr.f32.gmra.mxu0 %v323
    %v414 = vpop.f32.mrf.mxu0
    %v415 = vadd.f32 0.0, %v414
    %v416 = vpop.f32.mrf.mxu0
    %417 = vmatprep.mubr.f32.mxu0 0.0
    %418 = vmatmul.mubr.f32.gmra.mxu0 %v326
    %v419 = vpop.f32.mrf.mxu0
    %v420 = vadd.f32 0.0, %v419
    %v421 = vpop.f32.mrf.mxu0
    %422 = vmatprep.mubr.f32.mxu0 0.0
    %423 = vmatmul.mubr.f32.gmra.mxu0 %v329
    %v424 = vpop.f32.mrf.mxu0
    %v425 = vadd.f32 0.0, %v424
    %v426 = vpop.f32.mrf.mxu0
    %427 = vdwg.mxu0
    %v429 = vsel %vm318, %v62, 0
    %v432 = vsel %vm318, %v63, 0
    %v435 = vsel %vm318, %v64, 0
    %v438 = vsel %vm318, %v65, 0
    %440 = vmatprep.subr.mxu0 0.0
    %441 = vmatpush1.msra.mxu0 0.0
    %442 = vmatprep.subr.mxu0 0.0
    %443 = vmatpush1.msra.mxu0 0.0
    %444 = vmatprep.subr.mxu0 0.0
    %445 = vmatpush1.msra.mxu0 0.0
    %446 = vmatprep.subr.mxu0 0.0
    %447 = vmatpush1.msra.mxu0 0.0
    %448 = vmatprep.subr.mxu0 0.0
    %449 = vmatpush1.msra.mxu0 0.0
    %450 = vmatprep.subr.mxu0 0.0
    %451 = vmatpush1.msra.mxu0 0.0
    %452 = vmatprep.subr.mxu0 0.0
    %453 = vmatpush1.msra.mxu0 0.0
    %454 = vmatprep.subr.mxu0 0.0
    %455 = vmatpush1.msra.mxu0 0.0
    %456 = vmatprep.subr.mxu0 0.0
    %457 = vmatpush1.msra.mxu0 0.0
    %458 = vmatprep.subr.mxu0 0.0
    %459 = vmatpush1.msra.mxu0 0.0
    %460 = vmatprep.subr.mxu0 0.0
    %461 = vmatpush1.msra.mxu0 0.0
    %462 = vmatprep.subr.mxu0 0.0
    %463 = vmatpush1.msra.mxu0 0.0
    %464 = vmatprep.subr.mxu0 0.0
    %465 = vmatpush1.msra.mxu0 %v425
    %466 = vmatprep.subr.mxu0 0.0
    %467 = vmatpush1.msra.mxu0 %v420
    %468 = vmatprep.subr.mxu0 0.0
    %469 = vmatpush1.msra.mxu0 %v415
    %470 = vmatprep.subr.mxu0 0.0
    %471 = vmatpush1.msra.mxu0 %v410
    %472 = vmatprep.subr.mxu0 0.0
    %473 = vmatpush2.msra.mxu0 0.0
    %474 = vmatprep.subr.mxu0 0.0
    %475 = vmatpush2.msra.mxu0 0.0
    %476 = vmatprep.subr.mxu0 0.0
    %477 = vmatpush2.msra.mxu0 0.0
    %478 = vmatprep.subr.mxu0 0.0
    %479 = vmatpush2.msra.mxu0 0.0
    %480 = vmatprep.subr.mxu0 0.0
    %481 = vmatpush2.msra.mxu0 0.0
    %482 = vmatprep.subr.mxu0 0.0
    %483 = vmatpush2.msra.mxu0 0.0
    %484 = vmatprep.subr.mxu0 0.0
    %485 = vmatpush2.msra.mxu0 0.0
    %486 = vmatprep.subr.mxu0 0.0
    %487 = vmatpush2.msra.mxu0 0.0
    %488 = vmatprep.subr.mxu0 0.0
    %489 = vmatpush2.msra.mxu0 0.0
    %490 = vmatprep.subr.mxu0 0.0
    %491 = vmatpush2.msra.mxu0 0.0
    %492 = vmatprep.subr.mxu0 0.0
    %493 = vmatpush2.msra.mxu0 0.0
    %494 = vmatprep.subr.mxu0 0.0
    %495 = vmatpush2.msra.mxu0 0.0
    %496 = vmatprep.subr.mxu0 0.0
    %497 = vmatpush2.msra.mxu0 0.0
    %498 = vmatprep.subr.mxu0 0.0
    %499 = vmatpush2.msra.mxu0 0.0
    %500 = vmatprep.subr.mxu0 0.0
    %501 = vmatpush2.msra.mxu0 0.0
    %502 = vmatprep.subr.mxu0 0.0
    %503 = vmatpush2.msra.mxu0 0.0
    %504 = vmatprep.mubr.f32.mxu0 0.0
    %505 = vmatmul.mubr.f32.gmra.mxu0 %v429
    %v506 = vpop.f32.mrf.mxu0
    %v507 = vadd.f32 %v81, %v506
    %v508 = vpop.f32.mrf.mxu0
    %509 = vmatprep.mubr.f32.mxu0 0.0
    %510 = vmatmul.mubr.f32.gmra.mxu0 %v432
    %v511 = vpop.f32.mrf.mxu0
    %v512 = vadd.f32 %v82, %v511
    %v513 = vpop.f32.mrf.mxu0
    %514 = vmatprep.mubr.f32.mxu0 0.0
    %515 = vmatmul.mubr.f32.gmra.mxu0 %v435
    %v516 = vpop.f32.mrf.mxu0
    %v517 = vadd.f32 %v83, %v516
    %v518 = vpop.f32.mrf.mxu0
    %519 = vmatprep.mubr.f32.mxu0 0.0
    %520 = vmatmul.mubr.f32.gmra.mxu0 %v438
    %v521 = vpop.f32.mrf.mxu0
    %v522 = vadd.f32 %v84, %v521
    %v523 = vpop.f32.mrf.mxu0
    %524 = vdwg.mxu0
    %v525 = vsel %vm318, %v507, -inf
    %526 = vmax.xlane.f32.xlu0 %v525
    %v527 = vpop.xlane.xlu0 %526
    %v528 = vsel %vm318, %v512, -inf
    %529 = vmax.xlane.f32.xlu0 %v528
    %v530 = vpop.xlane.xlu0 %529
    %v531 = vsel %vm318, %v517, -inf
    %532 = vmax.xlane.f32.xlu0 %v531
    %v533 = vpop.xlane.xlu0 %532
    %v534 = vsel %vm318, %v522, -inf
    %535 = vmax.xlane.f32.xlu0 %v534
    %v536 = vpop.xlane.xlu0 %535
    %v537 = vsub.f32 %v507, %v527
    %v538 = vsub.f32 %v512, %v530
    %v539 = vsub.f32 %v517, %v533
    %v540 = vsub.f32 %v522, %v536
    %v541 = vmul.f32 %v537, 1.442695
    %v542 = vpow.pop %v541
    %v543 = vmul.f32 %v538, 1.442695
    %v544 = vpow.pop %v543
    %v545 = vmul.f32 %v539, 1.442695
    %v546 = vpow.pop %v545
    %v547 = vmul.f32 %v540, 1.442695
    %v548 = vpow.pop %v547
    %v549 = vsel %vm318, %v542, 0.0
    %550 = vadd.xlane.f32.xlu0 %v549
    %v551 = vpop.xlane.xlu0 %550
    %v552 = vsel %vm318, %v544, 0.0
    %553 = vadd.xlane.f32.xlu0 %v552
    %v554 = vpop.xlane.xlu0 %553
    %v555 = vsel %vm318, %v546, 0.0
    %556 = vadd.xlane.f32.xlu0 %v555
    %v557 = vpop.xlane.xlu0 %556
    %v558 = vsel %vm318, %v548, 0.0
    %559 = vadd.xlane.f32.xlu0 %v558
    %v560 = vpop.xlane.xlu0 %559
    %v561 = vrcp.pop %v551
    %v562 = vrcp.pop %v554
    %v563 = vrcp.pop %v557
    %v564 = vrcp.pop %v560
    %v565 = vmul.f32 %v542, %v561
    %v566 = vmul.f32 %v544, %v562
    %v567 = vmul.f32 %v546, %v563
    %v568 = vmul.f32 %v548, %v564
    %v570 = vsel %vm318, %v565, 0
    %v573 = vsel %vm318, %v566, 0
    %v576 = vsel %vm318, %v567, 0
    %v579 = vsel %vm318, %v568, 0
    %581 = vmatprep.subr.mxu0 0.0
    %582 = vmatpush1.msra.mxu0 0.0
    %583 = vmatprep.subr.mxu0 0.0
    %584 = vmatpush1.msra.mxu0 0.0
    %585 = vmatprep.subr.mxu0 0.0
    %586 = vmatpush1.msra.mxu0 0.0
    %587 = vmatprep.subr.mxu0 0.0
    %588 = vmatpush1.msra.mxu0 0.0
    %589 = vmatprep.subr.mxu0 0.0
    %590 = vmatpush1.msra.mxu0 0.0
    %591 = vmatprep.subr.mxu0 0.0
    %592 = vmatpush1.msra.mxu0 0.0
    %593 = vmatprep.subr.mxu0 0.0
    %594 = vmatpush1.msra.mxu0 0.0
    %595 = vmatprep.subr.mxu0 0.0
    %596 = vmatpush1.msra.mxu0 0.0
    %597 = vmatprep.subr.mxu0 0.0
    %598 = vmatpush1.msra.mxu0 0.0
    %599 = vmatprep.subr.mxu0 0.0
    %600 = vmatpush1.msra.mxu0 0.0
    %601 = vmatprep.subr.mxu0 0.0
    %602 = vmatpush1.msra.mxu0 0.0
    %603 = vmatprep.subr.mxu0 0.0
    %604 = vmatpush1.msra.mxu0 0.0
    %605 = vmatprep.subr.mxu0 0.0
    %606 = vmatpush1.msra.mxu0 %v75
    %607 = vmatprep.subr.mxu0 0.0
    %608 = vmatpush1.msra.mxu0 %v74
    %609 = vmatprep.subr.mxu0 0.0
    %610 = vmatpush1.msra.mxu0 %v73
    %611 = vmatprep.subr.mxu0 0.0
    %612 = vmatpush1.msra.mxu0 %v72
    %613 = vmatprep.subr.mxu0 0.0
    %614 = vmatpush2.msra.mxu0 0.0
    %615 = vmatprep.subr.mxu0 0.0
    %616 = vmatpush2.msra.mxu0 0.0
    %617 = vmatprep.subr.mxu0 0.0
    %618 = vmatpush2.msra.mxu0 0.0
    %619 = vmatprep.subr.mxu0 0.0
    %620 = vmatpush2.msra.mxu0 0.0
    %621 = vmatprep.subr.mxu0 0.0
    %622 = vmatpush2.msra.mxu0 0.0
    %623 = vmatprep.subr.mxu0 0.0
    %624 = vmatpush2.msra.mxu0 0.0
    %625 = vmatprep.subr.mxu0 0.0
    %626 = vmatpush2.msra.mxu0 0.0
    %627 = vmatprep.subr.mxu0 0.0
    %628 = vmatpush2.msra.mxu0 0.0
    %629 = vmatprep.subr.mxu0 0.0
    %630 = vmatpush2.msra.mxu0 0.0
    %631 = vmatprep.subr.mxu0 0.0
    %632 = vmatpush2.msra.mxu0 0.0
    %633 = vmatprep.subr.mxu0 0.0
    %634 = vmatpush2.msra.mxu0 0.0
    %635 = vmatprep.subr.mxu0 0.0
    %636 = vmatpush2.msra.mxu0 0.0
    %637 = vmatprep.subr.mxu0 0.0
    %638 = vmatpush2.msra.mxu0 0.0
    %639 = vmatprep.subr.mxu0 0.0
    %640 = vmatpush2.msra.mxu0 0.0
    %641 = vmatprep.subr.mxu0 0.0
    %642 = vmatpush2.msra.mxu0 0.0
    %643 = vmatprep.subr.mxu0 0.0
    %644 = vmatpush2.msra.mxu0 0.0
    %645 = vmatprep.mubr.f32.mxu0 0.0
    %646 = vmatmul.mubr.f32.gmra.mxu0 %v570
    %v647 = vpop.f32.mrf.mxu0
    %v648 = vadd.f32 0.0, %v647
    %v649 = vpop.f32.mrf.mxu0
    %650 = vmatprep.mubr.f32.mxu0 0.0
    %651 = vmatmul.mubr.f32.gmra.mxu0 %v573
    %v652 = vpop.f32.mrf.mxu0
    %v653 = vadd.f32 0.0, %v652
    %v654 = vpop.f32.mrf.mxu0
    %655 = vmatprep.mubr.f32.mxu0 0.0
    %656 = vmatmul.mubr.f32.gmra.mxu0 %v576
    %v657 = vpop.f32.mrf.mxu0
    %v658 = vadd.f32 0.0, %v657
    %v659 = vpop.f32.mrf.mxu0
    %660 = vmatprep.mubr.f32.mxu0 0.0
    %661 = vmatmul.mubr.f32.gmra.mxu0 %v579
    %v662 = vpop.f32.mrf.mxu0
    %v663 = vadd.f32 0.0, %v662
    %v664 = vpop.f32.mrf.mxu0
    %665 = vdwg.mxu0
    %v667 = vsel %vm318, %v77, 0
    %v670 = vsel %vm318, %v78, 0
    %v673 = vsel %vm318, %v79, 0
    %v676 = vsel %vm318, %v80, 0
    %678 = vmatprep.subr.mxu0 0.0
    %679 = vmatpush1.msra.mxu0 0.0
    %680 = vmatprep.subr.mxu0 0.0
    %681 = vmatpush1.msra.mxu0 0.0
    %682 = vmatprep.subr.mxu0 0.0
    %683 = vmatpush1.msra.mxu0 0.0
    %684 = vmatprep.subr.mxu0 0.0
    %685 = vmatpush1.msra.mxu0 0.0
    %686 = vmatprep.subr.mxu0 0.0
    %687 = vmatpush1.msra.mxu0 0.0
    %688 = vmatprep.subr.mxu0 0.0
    %689 = vmatpush1.msra.mxu0 0.0
    %690 = vmatprep.subr.mxu0 0.0
    %691 = vmatpush1.msra.mxu0 0.0
    %692 = vmatprep.subr.mxu0 0.0
    %693 = vmatpush1.msra.mxu0 0.0
    %694 = vmatprep.subr.mxu0 0.0
    %695 = vmatpush1.msra.mxu0 0.0
    %696 = vmatprep.subr.mxu0 0.0
    %697 = vmatpush1.msra.mxu0 0.0
    %698 = vmatprep.subr.mxu0 0.0
    %699 = vmatpush1.msra.mxu0 0.0
    %700 = vmatprep.subr.mxu0 0.0
    %701 = vmatpush1.msra.mxu0 0.0
    %702 = vmatprep.subr.mxu0 0.0
    %703 = vmatpush1.msra.mxu0 %v663
    %704 = vmatprep.subr.mxu0 0.0
    %705 = vmatpush1.msra.mxu0 %v658
    %706 = vmatprep.subr.mxu0 0.0
    %707 = vmatpush1.msra.mxu0 %v653
    %708 = vmatprep.subr.mxu0 0.0
    %709 = vmatpush1.msra.mxu0 %v648
    %710 = vmatprep.subr.mxu0 0.0
    %711 = vmatpush2.msra.mxu0 0.0
    %712 = vmatprep.subr.mxu0 0.0
    %713 = vmatpush2.msra.mxu0 0.0
    %714 = vmatprep.subr.mxu0 0.0
    %715 = vmatpush2.msra.mxu0 0.0
    %716 = vmatprep.subr.mxu0 0.0
    %717 = vmatpush2.msra.mxu0 0.0
    %718 = vmatprep.subr.mxu0 0.0
    %719 = vmatpush2.msra.mxu0 0.0
    %720 = vmatprep.subr.mxu0 0.0
    %721 = vmatpush2.msra.mxu0 0.0
    %722 = vmatprep.subr.mxu0 0.0
    %723 = vmatpush2.msra.mxu0 0.0
    %724 = vmatprep.subr.mxu0 0.0
    %725 = vmatpush2.msra.mxu0 0.0
    %726 = vmatprep.subr.mxu0 0.0
    %727 = vmatpush2.msra.mxu0 0.0
    %728 = vmatprep.subr.mxu0 0.0
    %729 = vmatpush2.msra.mxu0 0.0
    %730 = vmatprep.subr.mxu0 0.0
    %731 = vmatpush2.msra.mxu0 0.0
    %732 = vmatprep.subr.mxu0 0.0
    %733 = vmatpush2.msra.mxu0 0.0
    %734 = vmatprep.subr.mxu0 0.0
    %735 = vmatpush2.msra.mxu0 0.0
    %736 = vmatprep.subr.mxu0 0.0
    %737 = vmatpush2.msra.mxu0 0.0
    %738 = vmatprep.subr.mxu0 0.0
    %739 = vmatpush2.msra.mxu0 0.0
    %740 = vmatprep.subr.mxu0 0.0
    %741 = vmatpush2.msra.mxu0 0.0
    %742 = vmatprep.mubr.f32.mxu0 0.0
    %743 = vmatmul.mubr.f32.gmra.mxu0 %v667
    %v744 = vpop.f32.mrf.mxu0
    %v745 = vadd.f32 0.0, %v744
    %v746 = vpop.f32.mrf.mxu0
    %747 = vmatprep.mubr.f32.mxu0 0.0
    %748 = vmatmul.mubr.f32.gmra.mxu0 %v670
    %v749 = vpop.f32.mrf.mxu0
    %v750 = vadd.f32 0.0, %v749
    %v751 = vpop.f32.mrf.mxu0
    %752 = vmatprep.mubr.f32.mxu0 0.0
    %753 = vmatmul.mubr.f32.gmra.mxu0 %v673
    %v754 = vpop.f32.mrf.mxu0
    %v755 = vadd.f32 0.0, %v754
    %v756 = vpop.f32.mrf.mxu0
    %757 = vmatprep.mubr.f32.mxu0 0.0
    %758 = vmatmul.mubr.f32.gmra.mxu0 %v676
    %v759 = vpop.f32.mrf.mxu0
    %v760 = vadd.f32 0.0, %v759
    %v761 = vpop.f32.mrf.mxu0
    %762 = vdwg.mxu0
    %763 = vmatprep.subr.mxu0 0.0
    %764 = vmatpush1.msra.mxu0 0.0
    %765 = vmatprep.subr.mxu0 0.0
    %766 = vmatpush1.msra.mxu0 0.0
    %767 = vmatprep.subr.mxu0 0.0
    %768 = vmatpush1.msra.mxu0 0.0
    %769 = vmatprep.subr.mxu0 0.0
    %770 = vmatpush1.msra.mxu0 0.0
    %771 = vmatprep.subr.mxu0 0.0
    %772 = vmatpush1.msra.mxu0 0.0
    %773 = vmatprep.subr.mxu0 0.0
    %774 = vmatpush1.msra.mxu0 0.0
    %775 = vmatprep.subr.mxu0 0.0
    %776 = vmatpush1.msra.mxu0 0.0
    %777 = vmatprep.subr.mxu0 0.0
    %778 = vmatpush1.msra.mxu0 0.0
    %779 = vmatprep.subr.mxu0 0.0
    %780 = vmatpush1.msra.mxu0 0.0
    %781 = vmatprep.subr.mxu0 0.0
    %782 = vmatpush1.msra.mxu0 0.0
    %783 = vmatprep.subr.mxu0 0.0
    %784 = vmatpush1.msra.mxu0 0.0
    %785 = vmatprep.subr.mxu0 0.0
    %786 = vmatpush1.msra.mxu0 0.0
    %787 = vmatprep.subr.mxu0 0.0
    %788 = vmatpush1.msra.mxu0 %v88
    %789 = vmatprep.subr.mxu0 0.0
    %790 = vmatpush1.msra.mxu0 %v87
    %791 = vmatprep.subr.mxu0 0.0
    %792 = vmatpush1.msra.mxu0 %v86
    %793 = vmatprep.subr.mxu0 0.0
    %794 = vmatpush1.msra.mxu0 %v85
    %795 = vmatprep.subr.mxu0 0.0
    %796 = vmatpush2.msra.mxu0 0.0
    %797 = vmatprep.subr.mxu0 0.0
    %798 = vmatpush2.msra.mxu0 0.0
    %799 = vmatprep.subr.mxu0 0.0
    %800 = vmatpush2.msra.mxu0 0.0
    %801 = vmatprep.subr.mxu0 0.0
    %802 = vmatpush2.msra.mxu0 0.0
    %803 = vmatprep.subr.mxu0 0.0
    %804 = vmatpush2.msra.mxu0 0.0
    %805 = vmatprep.subr.mxu0 0.0
    %806 = vmatpush2.msra.mxu0 0.0
    %807 = vmatprep.subr.mxu0 0.0
    %808 = vmatpush2.msra.mxu0 0.0
    %809 = vmatprep.subr.mxu0 0.0
    %810 = vmatpush2.msra.mxu0 0.0
    %811 = vmatprep.subr.mxu0 0.0
    %812 = vmatpush2.msra.mxu0 0.0
    %813 = vmatprep.subr.mxu0 0.0
    %814 = vmatpush2.msra.mxu0 0.0
    %815 = vmatprep.subr.mxu0 0.0
    %816 = vmatpush2.msra.mxu0 0.0
    %817 = vmatprep.subr.mxu0 0.0
    %818 = vmatpush2.msra.mxu0 0.0
    %819 = vmatprep.subr.mxu0 0.0
    %820 = vmatpush2.msra.mxu0 0.0
    %821 = vmatprep.subr.mxu0 0.0
    %822 = vmatpush2.msra.mxu0 0.0
    %823 = vmatprep.subr.mxu0 0.0
    %824 = vmatpush2.msra.mxu0 0.0
    %825 = vmatprep.subr.mxu0 0.0
    %826 = vmatpush2.msra.mxu0 0.0
    %827 = vmatprep.mubr.f32.mxu0 0.0
    %828 = vmatmul.mubr.f32.gmra.mxu0 %v570
    %v829 = vpop.f32.mrf.mxu0
    %v830 = vadd.f32 0.0, %v829
    %v831 = vpop.f32.mrf.mxu0
    %832 = vmatprep.mubr.f32.mxu0 0.0
    %833 = vmatmul.mubr.f32.gmra.mxu0 %v573
    %v834 = vpop.f32.mrf.mxu0
    %v835 = vadd.f32 0.0, %v834
    %v836 = vpop.f32.mrf.mxu0
    %837 = vmatprep.mubr.f32.mxu0 0.0
    %838 = vmatmul.mubr.f32.gmra.mxu0 %v576
    %v839 = vpop.f32.mrf.mxu0
    %v840 = vadd.f32 0.0, %v839
    %v841 = vpop.f32.mrf.mxu0
    %842 = vmatprep.mubr.f32.mxu0 0.0
    %843 = vmatmul.mubr.f32.gmra.mxu0 %v579
    %v844 = vpop.f32.mrf.mxu0
    %v845 = vadd.f32 0.0, %v844
    %v846 = vpop.f32.mrf.mxu0
    %847 = vdwg.mxu0
    %852 = vrot.lane.b32.xlu0 %v85, 127
    %v853 = vpop.permute.xlu0 %852
    %854 = vrot.lane.b32.xlu0 %v86, 127
    %v855 = vpop.permute.xlu0 %854
    %856 = vrot.lane.b32.xlu0 %v87, 127
    %v857 = vpop.permute.xlu0 %856
    %858 = vrot.lane.b32.xlu0 %v88, 127
    %v859 = vpop.permute.xlu0 %858
    %864 = vmatprep.subr.mxu0 0.0
    %865 = vmatpush1.msra.mxu0 0.0
    %866 = vmatprep.subr.mxu0 0.0
    %867 = vmatpush1.msra.mxu0 0.0
    %868 = vmatprep.subr.mxu0 0.0
    %869 = vmatpush1.msra.mxu0 0.0
    %870 = vmatprep.subr.mxu0 0.0
    %871 = vmatpush1.msra.mxu0 0.0
    %872 = vmatprep.subr.mxu0 0.0
    %873 = vmatpush1.msra.mxu0 0.0
    %874 = vmatprep.subr.mxu0 0.0
    %875 = vmatpush1.msra.mxu0 0.0
    %876 = vmatprep.subr.mxu0 0.0
    %877 = vmatpush1.msra.mxu0 0.0
    %878 = vmatprep.subr.mxu0 0.0
    %879 = vmatpush1.msra.mxu0 0.0
    %880 = vmatprep.subr.mxu0 0.0
    %881 = vmatpush1.msra.mxu0 0.0
    %882 = vmatprep.subr.mxu0 0.0
    %883 = vmatpush1.msra.mxu0 0.0
    %884 = vmatprep.subr.mxu0 0.0
    %885 = vmatpush1.msra.mxu0 0.0
    %886 = vmatprep.subr.mxu0 0.0
    %887 = vmatpush1.msra.mxu0 0.0
    %888 = vmatprep.subr.mxu0 0.0
    %889 = vmatpush1.msra.mxu0 %v845
    %890 = vmatprep.subr.mxu0 0.0
    %891 = vmatpush1.msra.mxu0 %v840
    %892 = vmatprep.subr.mxu0 0.0
    %893 = vmatpush1.msra.mxu0 %v835
    %894 = vmatprep.subr.mxu0 0.0
    %895 = vmatpush1.msra.mxu0 %v830
    %896 = vmatprep.subr.mxu0 0.0
    %897 = vmatpush2.msra.mxu0 0.0
    %898 = vmatprep.subr.mxu0 0.0
    %899 = vmatpush2.msra.mxu0 0.0
    %900 = vmatprep.subr.mxu0 0.0
    %901 = vmatpush2.msra.mxu0 0.0
    %902 = vmatprep.subr.mxu0 0.0
    %903 = vmatpush2.msra.mxu0 0.0
    %904 = vmatprep.subr.mxu0 0.0
    %905 = vmatpush2.msra.mxu0 0.0
    %906 = vmatprep.subr.mxu0 0.0
    %907 = vmatpush2.msra.mxu0 0.0
    %908 = vmatprep.subr.mxu0 0.0
    %909 = vmatpush2.msra.mxu0 0.0
    %910 = vmatprep.subr.mxu0 0.0
    %911 = vmatpush2.msra.mxu0 0.0
    %912 = vmatprep.subr.mxu0 0.0
    %913 = vmatpush2.msra.mxu0 0.0
    %914 = vmatprep.subr.mxu0 0.0
    %915 = vmatpush2.msra.mxu0 0.0
    %916 = vmatprep.subr.mxu0 0.0
    %917 = vmatpush2.msra.mxu0 0.0
    %918 = vmatprep.subr.mxu0 0.0
    %919 = vmatpush2.msra.mxu0 0.0
    %920 = vmatprep.subr.mxu0 0.0
    %921 = vmatpush2.msra.mxu0 0.0
    %922 = vmatprep.subr.mxu0 0.0
    %923 = vmatpush2.msra.mxu0 0.0
    %924 = vmatprep.subr.mxu0 0.0
    %925 = vmatpush2.msra.mxu0 0.0
    %926 = vmatprep.subr.mxu0 0.0
    %927 = vmatpush2.msra.mxu0 0.0
    %928 = vmatprep.mubr.f32.mxu0 0.0
    %929 = vmatmul.mubr.f32.gmra.mxu0 %v667
    %v930 = vpop.f32.mrf.mxu0
    %v931 = vadd.f32 %v853, %v930
    %v932 = vpop.f32.mrf.mxu0
    %933 = vmatprep.mubr.f32.mxu0 0.0
    %934 = vmatmul.mubr.f32.gmra.mxu0 %v670
    %v935 = vpop.f32.mrf.mxu0
    %v936 = vadd.f32 %v855, %v935
    %v937 = vpop.f32.mrf.mxu0
    %938 = vmatprep.mubr.f32.mxu0 0.0
    %939 = vmatmul.mubr.f32.gmra.mxu0 %v673
    %v940 = vpop.f32.mrf.mxu0
    %v941 = vadd.f32 %v857, %v940
    %v942 = vpop.f32.mrf.mxu0
    %943 = vmatprep.mubr.f32.mxu0 0.0
    %944 = vmatmul.mubr.f32.gmra.mxu0 %v676
    %v945 = vpop.f32.mrf.mxu0
    %v946 = vadd.f32 %v859, %v945
    %v947 = vpop.f32.mrf.mxu0
    %948 = vdwg.mxu0
    %950 = vset.pattern.permute.xlu0 0
    %951 = vperm.xlu0 %950, %v931
    %v952 = vpop.permute.xlu0 %951
    %955 = vset.pattern.permute.xlu0 0
    %956 = vperm.xlu0 %955, %v936
    %v957 = vpop.permute.xlu0 %956
    %960 = vset.pattern.permute.xlu0 0
    %961 = vperm.xlu0 %960, %v941
    %v962 = vpop.permute.xlu0 %961
    %965 = vset.pattern.permute.xlu0 0
    %966 = vperm.xlu0 %965, %v946
    %v967 = vpop.permute.xlu0 %966
    %v970 = vsel %vm318, %v745, 0
    %v973 = vsel %vm318, %v750, 0
    %v976 = vsel %vm318, %v755, 0
    %v979 = vsel %vm318, %v760, 0
    %981 = vmatprep.subr.mxu0 0.0
    %982 = vmatpush1.msra.mxu0 0.0
    %983 = vmatprep.subr.mxu0 0.0
    %984 = vmatpush1.msra.mxu0 0.0
    %985 = vmatprep.subr.mxu0 0.0
    %986 = vmatpush1.msra.mxu0 0.0
    %987 = vmatprep.subr.mxu0 0.0
    %988 = vmatpush1.msra.mxu0 0.0
    %989 = vmatprep.subr.mxu0 0.0
    %990 = vmatpush1.msra.mxu0 0.0
    %991 = vmatprep.subr.mxu0 0.0
    %992 = vmatpush1.msra.mxu0 0.0
    %993 = vmatprep.subr.mxu0 0.0
    %994 = vmatpush1.msra.mxu0 0.0
    %995 = vmatprep.subr.mxu0 0.0
    %996 = vmatpush1.msra.mxu0 0.0
    %997 = vmatprep.subr.mxu0 0.0
    %998 = vmatpush1.msra.mxu0 0.0
    %999 = vmatprep.subr.mxu0 0.0
    %1000 = vmatpush1.msra.mxu0 0.0
    %1001 = vmatprep.subr.mxu0 0.0
    %1002 = vmatpush1.msra.mxu0 0.0
    %1003 = vmatprep.subr.mxu0 0.0
    %1004 = vmatpush1.msra.mxu0 0.0
    %1005 = vmatprep.subr.mxu0 %v104
    %1006 = vmatpush1.msra.mxu0 %v103
    %1007 = vmatprep.subr.mxu0 %v102
    %1008 = vmatpush1.msra.mxu0 %v101
    %1009 = vmatprep.subr.mxu0 %v100
    %1010 = vmatpush1.msra.mxu0 %v99
    %1011 = vmatprep.subr.mxu0 %v98
    %1012 = vmatpush1.msra.mxu0 %v97
    %1013 = vmatprep.subr.mxu0 0.0
    %1014 = vmatpush2.msra.mxu0 0.0
    %1015 = vmatprep.subr.mxu0 0.0
    %1016 = vmatpush2.msra.mxu0 0.0
    %1017 = vmatprep.subr.mxu0 0.0
    %1018 = vmatpush2.msra.mxu0 0.0
    %1019 = vmatprep.subr.mxu0 0.0
    %1020 = vmatpush2.msra.mxu0 0.0
    %1021 = vmatprep.subr.mxu0 0.0
    %1022 = vmatpush2.msra.mxu0 0.0
    %1023 = vmatprep.subr.mxu0 0.0
    %1024 = vmatpush2.msra.mxu0 0.0
    %1025 = vmatprep.subr.mxu0 0.0
    %1026 = vmatpush2.msra.mxu0 0.0
    %1027 = vmatprep.subr.mxu0 0.0
    %1028 = vmatpush2.msra.mxu0 0.0
    %1029 = vmatprep.subr.mxu0 0.0
    %1030 = vmatpush2.msra.mxu0 0.0
    %1031 = vmatprep.subr.mxu0 0.0
    %1032 = vmatpush2.msra.mxu0 0.0
    %1033 = vmatprep.subr.mxu0 0.0
    %1034 = vmatpush2.msra.mxu0 0.0
    %1035 = vmatprep.subr.mxu0 0.0
    %1036 = vmatpush2.msra.mxu0 0.0
    %1037 = vmatprep.subr.mxu0 0.0
    %1038 = vmatpush2.msra.mxu0 0.0
    %1039 = vmatprep.subr.mxu0 0.0
    %1040 = vmatpush2.msra.mxu0 0.0
    %1041 = vmatprep.subr.mxu0 0.0
    %1042 = vmatpush2.msra.mxu0 0.0
    %1043 = vmatprep.subr.mxu0 0.0
    %1044 = vmatpush2.msra.mxu0 0.0
    %1045 = vmatprep.mubr.f32.mxu0 0.0
    %1046 = vmatmul.mubr.f32.gmra.mxu0 %v970
    %v1047 = vpop.f32.mrf.mxu0
    %v1048 = vadd.f32 %v952, %v1047
    %v1049 = vpop.f32.mrf.mxu0
    %v1050 = vadd.f32 %v952, %v1049
    %1051 = vmatprep.mubr.f32.mxu0 0.0
    %1052 = vmatmul.mubr.f32.gmra.mxu0 %v973
    %v1053 = vpop.f32.mrf.mxu0
    %v1054 = vadd.f32 %v957, %v1053
    %v1055 = vpop.f32.mrf.mxu0
    %v1056 = vadd.f32 %v957, %v1055
    %1057 = vmatprep.mubr.f32.mxu0 0.0
    %1058 = vmatmul.mubr.f32.gmra.mxu0 %v976
    %v1059 = vpop.f32.mrf.mxu0
    %v1060 = vadd.f32 %v962, %v1059
    %v1061 = vpop.f32.mrf.mxu0
    %v1062 = vadd.f32 %v962, %v1061
    %1063 = vmatprep.mubr.f32.mxu0 0.0
    %1064 = vmatmul.mubr.f32.gmra.mxu0 %v979
    %v1065 = vpop.f32.mrf.mxu0
    %v1066 = vadd.f32 %v967, %v1065
    %v1067 = vpop.f32.mrf.mxu0
    %v1068 = vadd.f32 %v967, %v1067
    %1069 = vdwg.mxu0
    %v1070 = vadd.f32 %v1048, %v89
    %v1071 = vadd.f32 %v1050, %v90
    %v1072 = vadd.f32 %v1054, %v91
    %v1073 = vadd.f32 %v1056, %v92
    %v1074 = vadd.f32 %v1060, %v93
    %v1075 = vadd.f32 %v1062, %v94
    %v1076 = vadd.f32 %v1066, %v95
    %v1077 = vadd.f32 %v1068, %v96
    %1078 = vst [vmem:[#allocation8] sm:$0xff] %v1070
    %1079 = vst [vmem:[#allocation8 + $0x8] sm:$0xff] %v1071
    %1080 = vst [vmem:[#allocation8 + $0x10] sm:$0xff] %v1072
    %1081 = vst [vmem:[#allocation8 + $0x18] sm:$0xff] %v1073
    %1082 = vst [vmem:[#allocation8 + $0x20] sm:$0xff] %v1074
    %1083 = vst [vmem:[#allocation8 + $0x28] sm:$0xff] %v1075
    %1084 = vst [vmem:[#allocation8 + $0x30] sm:$0xff] %v1076
    %1085 = vst [vmem:[#allocation8 + $0x38] sm:$0xff] %v1077
    %s1086 = scalar_lea.vmem [#allocation2], 64
    %v1087 = vld [vmem:[%s1086] sm:$0xff]
    %v1088 = vld [vmem:[%s1086 + $0x8] sm:$0xff]
    %v1089 = vld [vmem:[%s1086 + $0x10] sm:$0xff]
    %v1090 = vld [vmem:[%s1086 + $0x18] sm:$0xff]
    %v1091 = vld [vmem:[%s1086 + $0x20] sm:$0xff]
    %v1092 = vld [vmem:[%s1086 + $0x28] sm:$0xff]
    %v1093 = vld [vmem:[%s1086 + $0x30] sm:$0xff]
    %v1094 = vld [vmem:[%s1086 + $0x38] sm:$0xff]
    %s1095 = scalar_lea.vmem [#allocation5], 64
    %v1096 = vld [vmem:[%s1095] sm:$0xff]
    %v1097 = vld [vmem:[%s1095 + $0x8] sm:$0xff]
    %v1098 = vld [vmem:[%s1095 + $0x10] sm:$0xff]
    %v1099 = vld [vmem:[%s1095 + $0x18] sm:$0xff]
    %v1100 = vld [vmem:[%s1095 + $0x20] sm:$0xff]
    %v1101 = vld [vmem:[%s1095 + $0x28] sm:$0xff]
    %v1102 = vld [vmem:[%s1095 + $0x30] sm:$0xff]
    %v1103 = vld [vmem:[%s1095 + $0x38] sm:$0xff]
    %v1104 = vadd.f32 %v1087, %v1088
    %1105 = vadd.xlane.f32.xlu0 %v1104
    %v1106 = vpop.xlane.xlu0 %1105
    %v1107 = vadd.f32 %v1089, %v1090
    %1108 = vadd.xlane.f32.xlu0 %v1107
    %v1109 = vpop.xlane.xlu0 %1108
    %v1110 = vadd.f32 %v1091, %v1092
    %1111 = vadd.xlane.f32.xlu0 %v1110
    %v1112 = vpop.xlane.xlu0 %1111
    %v1113 = vadd.f32 %v1093, %v1094
    %1114 = vadd.xlane.f32.xlu0 %v1113
    %v1115 = vpop.xlane.xlu0 %1114
    %v1116 = vmul.f32 %v1106, 0.00390625
    %v1117 = vmul.f32 %v1109, 0.00390625
    %v1118 = vmul.f32 %v1112, 0.00390625
    %v1119 = vmul.f32 %v1115, 0.00390625
    %v1120 = vsub.f32 %v1087, %v1116
    %v1121 = vsub.f32 %v1088, %v1116
    %v1122 = vsub.f32 %v1089, %v1117
    %v1123 = vsub.f32 %v1090, %v1117
    %v1124 = vsub.f32 %v1091, %v1118
    %v1125 = vsub.f32 %v1092, %v1118
    %v1126 = vsub.f32 %v1093, %v1119
    %v1127 = vsub.f32 %v1094, %v1119
    %v1128 = vmul.f32 %v1120, %v1120
    %v1129 = vmul.f32 %v1121, %v1121
    %v1130 = vmul.f32 %v1122, %v1122
    %v1131 = vmul.f32 %v1123, %v1123
    %v1132 = vmul.f32 %v1124, %v1124
    %v1133 = vmul.f32 %v1125, %v1125
    %v1134 = vmul.f32 %v1126, %v1126
    %v1135 = vmul.f32 %v1127, %v1127
    %v1136 = vadd.f32 %v1128, %v1129
    %1137 = vadd.xlane.f32.xlu0 %v1136
    %v1138 = vpop.xlane.xlu0 %1137
    %v1139 = vadd.f32 %v1130, %v1131
    %1140 = vadd.xlane.f32.xlu0 %v1139
    %v1141 = vpop.xlane.xlu0 %1140
    %v1142 = vadd.f32 %v1132, %v1133
    %1143 = vadd.xlane.f32.xlu0 %v1142
    %v1144 = vpop.xlane.xlu0 %1143
    %v1145 = vadd.f32 %v1134, %v1135
    %1146 = vadd.xlane.f32.xlu0 %v1145
    %v1147 = vpop.xlane.xlu0 %1146
    %v1148 = vmul.f32 %v1138, 0.003921569
    %v1149 = vmul.f32 %v1141, 0.003921569
    %v1150 = vmul.f32 %v1144, 0.003921569
    %v1151 = vmul.f32 %v1147, 0.003921569
    %v1152 = vadd.f32 %v1148, 1e-05
    %v1153 = vadd.f32 %v1149, 1e-05
    %v1154 = vadd.f32 %v1150, 1e-05
    %v1155 = vadd.f32 %v1151, 1e-05
    %v1156 = vrsqrt.pop %v1152
    %v1157 = vrsqrt.pop %v1153
    %v1158 = vrsqrt.pop %v1154
    %v1159 = vrsqrt.pop %v1155
    %v1160 = vmul.f32 %v1120, %v1156
    %v1161 = vmul.f32 %v1121, %v1156
    %v1162 = vmul.f32 %v1122, %v1157
    %v1163 = vmul.f32 %v1123, %v1157
    %v1164 = vmul.f32 %v1124, %v1158
    %v1165 = vmul.f32 %v1125, %v1158
    %v1166 = vmul.f32 %v1126, %v1159
    %v1167 = vmul.f32 %v1127, %v1159
    %v1168 = vadd.f32 %v1096, %v1097
    %1169 = vadd.xlane.f32.xlu0 %v1168
    %v1170 = vpop.xlane.xlu0 %1169
    %v1171 = vadd.f32 %v1098, %v1099
    %1172 = vadd.xlane.f32.xlu0 %v1171
    %v1173 = vpop.xlane.xlu0 %1172
    %v1174 = vadd.f32 %v1100, %v1101
    %1175 = vadd.xlane.f32.xlu0 %v1174
    %v1176 = vpop.xlane.xlu0 %1175
    %v1177 = vadd.f32 %v1102, %v1103
    %1178 = vadd.xlane.f32.xlu0 %v1177
    %v1179 = vpop.xlane.xlu0 %1178
    %v1180 = vmul.f32 %v1170, 0.00390625
    %v1181 = vmul.f32 %v1173, 0.00390625
    %v1182 = vmul.f32 %v1176, 0.00390625
    %v1183 = vmul.f32 %v1179, 0.00390625
    %v1184 = vsub.f32 %v1096, %v1180
    %v1185 = vsub.f32 %v1097, %v1180
    %v1186 = vsub.f32 %v1098, %v1181
    %v1187 = vsub.f32 %v1099, %v1181
    %v1188 = vsub.f32 %v1100, %v1182
    %v1189 = vsub.f32 %v1101, %v1182
    %v1190 = vsub.f32 %v1102, %v1183
    %v1191 = vsub.f32 %v1103, %v1183
    %v1192 = vmul.f32 %v1184, %v1184
    %v1193 = vmul.f32 %v1185, %v1185
    %v1194 = vmul.f32 %v1186, %v1186
    %v1195 = vmul.f32 %v1187, %v1187
    %v1196 = vmul.f32 %v1188, %v1188
    %v1197 = vmul.f32 %v1189, %v1189
    %v1198 = vmul.f32 %v1190, %v1190
    %v1199 = vmul.f32 %v1191, %v1191
    %v1200 = vadd.f32 %v1192, %v1193
    %1201 = vadd.xlane.f32.xlu0 %v1200
    %v1202 = vpop.xlane.xlu0 %1201
    %v1203 = vadd.f32 %v1194, %v1195
    %1204 = vadd.xlane.f32.xlu0 %v1203
    %v1205 = vpop.xlane.xlu0 %1204
    %v1206 = vadd.f32 %v1196, %v1197
    %1207 = vadd.xlane.f32.xlu0 %v1206
    %v1208 = vpop.xlane.xlu0 %1207
    %v1209 = vadd.f32 %v1198, %v1199
    %1210 = vadd.xlane.f32.xlu0 %v1209
    %v1211 = vpop.xlane.xlu0 %1210
    %v1212 = vmul.f32 %v1202, 0.003921569
    %v1213 = vmul.f32 %v1205, 0.003921569
    %v1214 = vmul.f32 %v1208, 0.003921569
    %v1215 = vmul.f32 %v1211, 0.003921569
    %v1216 = vadd.f32 %v1212, 1e-05
    %v1217 = vadd.f32 %v1213, 1e-05
    %v1218 = vadd.f32 %v1214, 1e-05
    %v1219 = vadd.f32 %v1215, 1e-05
    %v1220 = vrsqrt.pop %v1216
    %v1221 = vrsqrt.pop %v1217
    %v1222 = vrsqrt.pop %v1218
    %v1223 = vrsqrt.pop %v1219
    %v1224 = vmul.f32 %v1184, %v1220
    %v1225 = vmul.f32 %v1185, %v1220
    %v1226 = vmul.f32 %v1186, %v1221
    %v1227 = vmul.f32 %v1187, %v1221
    %v1228 = vmul.f32 %v1188, %v1222
    %v1229 = vmul.f32 %v1189, %v1222
    %v1230 = vmul.f32 %v1190, %v1223
    %v1231 = vmul.f32 %v1191, %v1223
    %1232 = vmatprep.subr.mxu0 0.0
    %1233 = vmatpush1.xpose.msra.mxu0 0.0
    %1234 = vmatprep.subr.mxu0 0.0
    %1235 = vmatpush1.xpose.msra.mxu0 0.0
    %1236 = vmatprep.subr.mxu0 0.0
    %1237 = vmatpush1.xpose.msra.mxu0 0.0
    %1238 = vmatprep.subr.mxu0 0.0
    %1239 = vmatpush1.xpose.msra.mxu0 0.0
    %1240 = vmatprep.subr.mxu0 0.0
    %1241 = vmatpush1.xpose.msra.mxu0 0.0
    %1242 = vmatprep.subr.mxu0 0.0
    %1243 = vmatpush1.xpose.msra.mxu0 0.0
    %1244 = vmatprep.subr.mxu0 0.0
    %1245 = vmatpush1.xpose.msra.mxu0 0.0
    %1246 = vmatprep.subr.mxu0 0.0
    %1247 = vmatpush1.xpose.msra.mxu0 0.0
    %1248 = vmatprep.subr.mxu0 0.0
    %1249 = vmatpush1.xpose.msra.mxu0 0.0
    %1250 = vmatprep.subr.mxu0 0.0
    %1251 = vmatpush1.xpose.msra.mxu0 0.0
    %1252 = vmatprep.subr.mxu0 0.0
    %1253 = vmatpush1.xpose.msra.mxu0 0.0
    %1254 = vmatprep.subr.mxu0 0.0
    %1255 = vmatpush1.xpose.msra.mxu0 0.0
    %1256 = vmatprep.subr.mxu0 %v1231
    %1257 = vmatpush1.xpose.msra.mxu0 %v1230
    %1258 = vmatprep.subr.mxu0 %v1229
    %1259 = vmatpush1.xpose.msra.mxu0 %v1228
    %1260 = vmatprep.subr.mxu0 %v1227
    %1261 = vmatpush1.xpose.msra.mxu0 %v1226
    %1262 = vmatprep.subr.mxu0 %v1225
    %1263 = vmatpush1.xpose.msra.mxu0 %v1224
    %1264 = vmatprep.subr.mxu0 0.0
    %1265 = vmatpush2.xpose.msra.mxu0 0.0
    %1266 = vmatprep.subr.mxu0 0.0
    %1267 = vmatpush2.xpose.msra.mxu0 0.0
    %1268 = vmatprep.subr.mxu0 0.0
    %1269 = vmatpush2.xpose.msra.mxu0 0.0
    %1270 = vmatprep.subr.mxu0 0.0
    %1271 = vmatpush2.xpose.msra.mxu0 0.0
    %1272 = vmatprep.subr.mxu0 0.0
    %1273 = vmatpush2.xpose.msra.mxu0 0.0
    %1274 = vmatprep.subr.mxu0 0.0
    %1275 = vmatpush2.xpose.msra.mxu0 0.0
    %1276 = vmatprep.subr.mxu0 0.0
    %1277 = vmatpush2.xpose.msra.mxu0 0.0
    %1278 = vmatprep.subr.mxu0 0.0
    %1279 = vmatpush2.xpose.msra.mxu0 0.0
    %1280 = vmatprep.subr.mxu0 0.0
    %1281 = vmatpush2.xpose.msra.mxu0 0.0
    %1282 = vmatprep.subr.mxu0 0.0
    %1283 = vmatpush2.xpose.msra.mxu0 0.0
    %1284 = vmatprep.subr.mxu0 0.0
    %1285 = vmatpush2.xpose.msra.mxu0 0.0
    %1286 = vmatprep.subr.mxu0 0.0
    %1287 = vmatpush2.xpose.msra.mxu0 0.0
    %1288 = vmatprep.subr.mxu0 0.0
    %1289 = vmatpush2.xpose.msra.mxu0 0.0
    %1290 = vmatprep.subr.mxu0 0.0
    %1291 = vmatpush2.xpose.msra.mxu0 0.0
    %1292 = vmatprep.subr.mxu0 0.0
    %1293 = vmatpush2.xpose.msra.mxu0 0.0
    %1294 = vmatprep.subr.mxu0 0.0
    %1295 = vmatpush2.xpose.msra.mxu0 0.0
    %1296 = vmatprep.mubr.f32.mxu0 %v1161
    %1297 = vmatmul.mubr.f32.gmra.mxu0 %v1160
    %v1298 = vpop.f32.mrf.mxu0
    %v1299 = vadd.f32 0.0, %v1298
    %v1300 = vpop.f32.mrf.mxu0
    %1301 = vmatprep.mubr.f32.mxu0 %v1163
    %1302 = vmatmul.mubr.f32.gmra.mxu0 %v1162
    %v1303 = vpop.f32.mrf.mxu0
    %v1304 = vadd.f32 0.0, %v1303
    %v1305 = vpop.f32.mrf.mxu0
    %1306 = vmatprep.mubr.f32.mxu0 %v1165
    %1307 = vmatmul.mubr.f32.gmra.mxu0 %v1164
    %v1308 = vpop.f32.mrf.mxu0
    %v1309 = vadd.f32 0.0, %v1308
    %v1310 = vpop.f32.mrf.mxu0
    %1311 = vmatprep.mubr.f32.mxu0 %v1167
    %1312 = vmatmul.mubr.f32.gmra.mxu0 %v1166
    %v1313 = vpop.f32.mrf.mxu0
    %v1314 = vadd.f32 0.0, %v1313
    %v1315 = vpop.f32.mrf.mxu0
    %1316 = vdwg.mxu0
    %v1318 = vsel %vm318, %v1299, 0
    %v1321 = vsel %vm318, %v1304, 0
    %v1324 = vsel %vm318, %v1309, 0
    %v1327 = vsel %vm318, %v1314, 0
    %1329 = vmatprep.subr.mxu0 0.0
    %1330 = vmatpush1.xpose.msra.mxu0 0.0
    %1331 = vmatprep.subr.mxu0 0.0
    %1332 = vmatpush1.xpose.msra.mxu0 0.0
    %1333 = vmatprep.subr.mxu0 0.0
    %1334 = vmatpush1.xpose.msra.mxu0 0.0
    %1335 = vmatprep.subr.mxu0 0.0
    %1336 = vmatpush1.xpose.msra.mxu0 0.0
    %1337 = vmatprep.subr.mxu0 0.0
    %1338 = vmatpush1.xpose.msra.mxu0 0.0
    %1339 = vmatprep.subr.mxu0 0.0
    %1340 = vmatpush1.xpose.msra.mxu0 0.0
    %1341 = vmatprep.subr.mxu0 0.0
    %1342 = vmatpush1.xpose.msra.mxu0 0.0
    %1343 = vmatprep.subr.mxu0 0.0
    %1344 = vmatpush1.xpose.msra.mxu0 0.0
    %1345 = vmatprep.subr.mxu0 0.0
    %1346 = vmatpush1.xpose.msra.mxu0 0.0
    %1347 = vmatprep.subr.mxu0 0.0
    %1348 = vmatpush1.xpose.msra.mxu0 0.0
    %1349 = vmatprep.subr.mxu0 0.0
    %1350 = vmatpush1.xpose.msra.mxu0 0.0
    %1351 = vmatprep.subr.mxu0 0.0
    %1352 = vmatpush1.xpose.msra.mxu0 0.0
    %1353 = vmatprep.subr.mxu0 0.0
    %1354 = vmatpush1.xpose.msra.mxu0 %v341
    %1355 = vmatprep.subr.mxu0 0.0
    %1356 = vmatpush1.xpose.msra.mxu0 %v338
    %1357 = vmatprep.subr.mxu0 0.0
    %1358 = vmatpush1.xpose.msra.mxu0 %v335
    %1359 = vmatprep.subr.mxu0 0.0
    %1360 = vmatpush1.xpose.msra.mxu0 %v332
    %1361 = vmatprep.subr.mxu0 0.0
    %1362 = vmatpush2.xpose.msra.mxu0 0.0
    %1363 = vmatprep.subr.mxu0 0.0
    %1364 = vmatpush2.xpose.msra.mxu0 0.0
    %1365 = vmatprep.subr.mxu0 0.0
    %1366 = vmatpush2.xpose.msra.mxu0 0.0
    %1367 = vmatprep.subr.mxu0 0.0
    %1368 = vmatpush2.xpose.msra.mxu0 0.0
    %1369 = vmatprep.subr.mxu0 0.0
    %1370 = vmatpush2.xpose.msra.mxu0 0.0
    %1371 = vmatprep.subr.mxu0 0.0
    %1372 = vmatpush2.xpose.msra.mxu0 0.0
    %1373 = vmatprep.subr.mxu0 0.0
    %1374 = vmatpush2.xpose.msra.mxu0 0.0
    %1375 = vmatprep.subr.mxu0 0.0
    %1376 = vmatpush2.xpose.msra.mxu0 0.0
    %1377 = vmatprep.subr.mxu0 0.0
    %1378 = vmatpush2.xpose.msra.mxu0 0.0
    %1379 = vmatprep.subr.mxu0 0.0
    %1380 = vmatpush2.xpose.msra.mxu0 0.0
    %1381 = vmatprep.subr.mxu0 0.0
    %1382 = vmatpush2.xpose.msra.mxu0 0.0
    %1383 = vmatprep.subr.mxu0 0.0
    %1384 = vmatpush2.xpose.msra.mxu0 0.0
    %1385 = vmatprep.subr.mxu0 0.0
    %1386 = vmatpush2.xpose.msra.mxu0 0.0
    %1387 = vmatprep.subr.mxu0 0.0
    %1388 = vmatpush2.xpose.msra.mxu0 0.0
    %1389 = vmatprep.subr.mxu0 0.0
    %1390 = vmatpush2.xpose.msra.mxu0 0.0
    %1391 = vmatprep.subr.mxu0 0.0
    %1392 = vmatpush2.xpose.msra.mxu0 0.0
    %1393 = vmatprep.mubr.f32.mxu0 0.0
    %1394 = vmatmul.mubr.f32.gmra.mxu0 %v1318
    %v1395 = vpop.f32.mrf.mxu0
    %v1396 = vadd.f32 0.0, %v1395
    %v1397 = vpop.f32.mrf.mxu0
    %1398 = vmatprep.mubr.f32.mxu0 0.0
    %1399 = vmatmul.mubr.f32.gmra.mxu0 %v1321
    %v1400 = vpop.f32.mrf.mxu0
    %v1401 = vadd.f32 0.0, %v1400
    %v1402 = vpop.f32.mrf.mxu0
    %1403 = vmatprep.mubr.f32.mxu0 0.0
    %1404 = vmatmul.mubr.f32.gmra.mxu0 %v1324
    %v1405 = vpop.f32.mrf.mxu0
    %v1406 = vadd.f32 0.0, %v1405
    %v1407 = vpop.f32.mrf.mxu0
    %1408 = vmatprep.mubr.f32.mxu0 0.0
    %1409 = vmatmul.mubr.f32.gmra.mxu0 %v1327
    %v1410 = vpop.f32.mrf.mxu0
    %v1411 = vadd.f32 0.0, %v1410
    %v1412 = vpop.f32.mrf.mxu0
    %1413 = vdwg.mxu0
    %1414 = vmatprep.subr.mxu0 0.0
    %1415 = vmatpush1.msra.mxu0 0.0
    %1416 = vmatprep.subr.mxu0 0.0
    %1417 = vmatpush1.msra.mxu0 0.0
    %1418 = vmatprep.subr.mxu0 0.0
    %1419 = vmatpush1.msra.mxu0 0.0
    %1420 = vmatprep.subr.mxu0 0.0
    %1421 = vmatpush1.msra.mxu0 0.0
    %1422 = vmatprep.subr.mxu0 0.0
    %1423 = vmatpush1.msra.mxu0 0.0
    %1424 = vmatprep.subr.mxu0 0.0
    %1425 = vmatpush1.msra.mxu0 0.0
    %1426 = vmatprep.subr.mxu0 0.0
    %1427 = vmatpush1.msra.mxu0 0.0
    %1428 = vmatprep.subr.mxu0 0.0
    %1429 = vmatpush1.msra.mxu0 0.0
    %1430 = vmatprep.subr.mxu0 0.0
    %1431 = vmatpush1.msra.mxu0 0.0
    %1432 = vmatprep.subr.mxu0 0.0
    %1433 = vmatpush1.msra.mxu0 0.0
    %1434 = vmatprep.subr.mxu0 0.0
    %1435 = vmatpush1.msra.mxu0 0.0
    %1436 = vmatprep.subr.mxu0 0.0
    %1437 = vmatpush1.msra.mxu0 0.0
    %1438 = vmatprep.subr.mxu0 0.0
    %1439 = vmatpush1.msra.mxu0 %v1411
    %1440 = vmatprep.subr.mxu0 0.0
    %1441 = vmatpush1.msra.mxu0 %v1406
    %1442 = vmatprep.subr.mxu0 0.0
    %1443 = vmatpush1.msra.mxu0 %v1401
    %1444 = vmatprep.subr.mxu0 0.0
    %1445 = vmatpush1.msra.mxu0 %v1396
    %1446 = vmatprep.subr.mxu0 0.0
    %1447 = vmatpush2.msra.mxu0 0.0
    %1448 = vmatprep.subr.mxu0 0.0
    %1449 = vmatpush2.msra.mxu0 0.0
    %1450 = vmatprep.subr.mxu0 0.0
    %1451 = vmatpush2.msra.mxu0 0.0
    %1452 = vmatprep.subr.mxu0 0.0
    %1453 = vmatpush2.msra.mxu0 0.0
    %1454 = vmatprep.subr.mxu0 0.0
    %1455 = vmatpush2.msra.mxu0 0.0
    %1456 = vmatprep.subr.mxu0 0.0
    %1457 = vmatpush2.msra.mxu0 0.0
    %1458 = vmatprep.subr.mxu0 0.0
    %1459 = vmatpush2.msra.mxu0 0.0
    %1460 = vmatprep.subr.mxu0 0.0
    %1461 = vmatpush2.msra.mxu0 0.0
    %1462 = vmatprep.subr.mxu0 0.0
    %1463 = vmatpush2.msra.mxu0 0.0
    %1464 = vmatprep.subr.mxu0 0.0
    %1465 = vmatpush2.msra.mxu0 0.0
    %1466 = vmatprep.subr.mxu0 0.0
    %1467 = vmatpush2.msra.mxu0 0.0
    %1468 = vmatprep.subr.mxu0 0.0
    %1469 = vmatpush2.msra.mxu0 0.0
    %1470 = vmatprep.subr.mxu0 0.0
    %1471 = vmatpush2.msra.mxu0 0.0
    %1472 = vmatprep.subr.mxu0 0.0
    %1473 = vmatpush2.msra.mxu0 0.0
    %1474 = vmatprep.subr.mxu0 0.0
    %1475 = vmatpush2.msra.mxu0 0.0
    %1476 = vmatprep.subr.mxu0 0.0
    %1477 = vmatpush2.msra.mxu0 0.0
    %1478 = vmatprep.mubr.f32.mxu0 0.0
    %1479 = vmatmul.mubr.f32.gmra.mxu0 %v429
    %v1480 = vpop.f32.mrf.mxu0
    %v1481 = vadd.f32 %v81, %v1480
    %v1482 = vpop.f32.mrf.mxu0
    %1483 = vmatprep.mubr.f32.mxu0 0.0
    %1484 = vmatmul.mubr.f32.gmra.mxu0 %v432
    %v1485 = vpop.f32.mrf.mxu0
    %v1486 = vadd.f32 %v82, %v1485
    %v1487 = vpop.f32.mrf.mxu0
    %1488 = vmatprep.mubr.f32.mxu0 0.0
    %1489 = vmatmul.mubr.f32.gmra.mxu0 %v435
    %v1490 = vpop.f32.mrf.mxu0
    %v1491 = vadd.f32 %v83, %v1490
    %v1492 = vpop.f32.mrf.mxu0
    %1493 = vmatprep.mubr.f32.mxu0 0.0
    %1494 = vmatmul.mubr.f32.gmra.mxu0 %v438
    %v1495 = vpop.f32.mrf.mxu0
    %v1496 = vadd.f32 %v84, %v1495
    %v1497 = vpop.f32.mrf.mxu0
    %1498 = vdwg.mxu0
    %v1499 = vsel %vm318, %v1481, -inf
    %1500 = vmax.xlane.f32.xlu0 %v1499
    %v1501 = vpop.xlane.xlu0 %1500
    %v1502 = vsel %vm318, %v1486, -inf
    %1503 = vmax.xlane.f32.xlu0 %v1502
    %v1504 = vpop.xlane.xlu0 %1503
    %v1505 = vsel %vm318, %v1491, -inf
    %1506 = vmax.xlane.f32.xlu0 %v1505
    %v1507 = vpop.xlane.xlu0 %1506
    %v1508 = vsel %vm318, %v1496, -inf
    %1509 = vmax.xlane.f32.xlu0 %v1508
    %v1510 = vpop.xlane.xlu0 %1509
    %v1511 = vsub.f32 %v1481, %v1501
    %v1512 = vsub.f32 %v1486, %v1504
    %v1513 = vsub.f32 %v1491, %v1507
    %v1514 = vsub.f32 %v1496, %v1510
    %v1515 = vmul.f32 %v1511, 1.442695
    %v1516 = vpow.pop %v1515
    %v1517 = vmul.f32 %v1512, 1.442695
    %v1518 = vpow.pop %v1517
    %v1519 = vmul.f32 %v1513, 1.442695
    %v1520 = vpow.pop %v1519
    %v1521 = vmul.f32 %v1514, 1.442695
    %v1522 = vpow.pop %v1521
    %v1523 = vsel %vm318, %v1516, 0.0
    %1524 = vadd.xlane.f32.xlu0 %v1523
    %v1525 = vpop.xlane.xlu0 %1524
    %v1526 = vsel %vm318, %v1518, 0.0
    %1527 = vadd.xlane.f32.xlu0 %v1526
    %v1528 = vpop.xlane.xlu0 %1527
    %v1529 = vsel %vm318, %v1520, 0.0
    %1530 = vadd.xlane.f32.xlu0 %v1529
    %v1531 = vpop.xlane.xlu0 %1530
    %v1532 = vsel %vm318, %v1522, 0.0
    %1533 = vadd.xlane.f32.xlu0 %v1532
    %v1534 = vpop.xlane.xlu0 %1533
    %v1535 = vrcp.pop %v1525
    %v1536 = vrcp.pop %v1528
    %v1537 = vrcp.pop %v1531
    %v1538 = vrcp.pop %v1534
    %v1539 = vmul.f32 %v1516, %v1535
    %v1540 = vmul.f32 %v1518, %v1536
    %v1541 = vmul.f32 %v1520, %v1537
    %v1542 = vmul.f32 %v1522, %v1538
    %v1544 = vsel %vm318, %v1539, 0
    %v1547 = vsel %vm318, %v1540, 0
    %v1550 = vsel %vm318, %v1541, 0
    %v1553 = vsel %vm318, %v1542, 0
    %1555 = vmatprep.subr.mxu0 0.0
    %1556 = vmatpush1.msra.mxu0 0.0
    %1557 = vmatprep.subr.mxu0 0.0
    %1558 = vmatpush1.msra.mxu0 0.0
    %1559 = vmatprep.subr.mxu0 0.0
    %1560 = vmatpush1.msra.mxu0 0.0
    %1561 = vmatprep.subr.mxu0 0.0
    %1562 = vmatpush1.msra.mxu0 0.0
    %1563 = vmatprep.subr.mxu0 0.0
    %1564 = vmatpush1.msra.mxu0 0.0
    %1565 = vmatprep.subr.mxu0 0.0
    %1566 = vmatpush1.msra.mxu0 0.0
    %1567 = vmatprep.subr.mxu0 0.0
    %1568 = vmatpush1.msra.mxu0 0.0
    %1569 = vmatprep.subr.mxu0 0.0
    %1570 = vmatpush1.msra.mxu0 0.0
    %1571 = vmatprep.subr.mxu0 0.0
    %1572 = vmatpush1.msra.mxu0 0.0
    %1573 = vmatprep.subr.mxu0 0.0
    %1574 = vmatpush1.msra.mxu0 0.0
    %1575 = vmatprep.subr.mxu0 0.0
    %1576 = vmatpush1.msra.mxu0 0.0
    %1577 = vmatprep.subr.mxu0 0.0
    %1578 = vmatpush1.msra.mxu0 0.0
    %1579 = vmatprep.subr.mxu0 0.0
    %1580 = vmatpush1.msra.mxu0 %v75
    %1581 = vmatprep.subr.mxu0 0.0
    %1582 = vmatpush1.msra.mxu0 %v74
    %1583 = vmatprep.subr.mxu0 0.0
    %1584 = vmatpush1.msra.mxu0 %v73
    %1585 = vmatprep.subr.mxu0 0.0
    %1586 = vmatpush1.msra.mxu0 %v72
    %1587 = vmatprep.subr.mxu0 0.0
    %1588 = vmatpush2.msra.mxu0 0.0
    %1589 = vmatprep.subr.mxu0 0.0
    %1590 = vmatpush2.msra.mxu0 0.0
    %1591 = vmatprep.subr.mxu0 0.0
    %1592 = vmatpush2.msra.mxu0 0.0
    %1593 = vmatprep.subr.mxu0 0.0
    %1594 = vmatpush2.msra.mxu0 0.0
    %1595 = vmatprep.subr.mxu0 0.0
    %1596 = vmatpush2.msra.mxu0 0.0
    %1597 = vmatprep.subr.mxu0 0.0
    %1598 = vmatpush2.msra.mxu0 0.0
    %1599 = vmatprep.subr.mxu0 0.0
    %1600 = vmatpush2.msra.mxu0 0.0
    %1601 = vmatprep.subr.mxu0 0.0
    %1602 = vmatpush2.msra.mxu0 0.0
    %1603 = vmatprep.subr.mxu0 0.0
    %1604 = vmatpush2.msra.mxu0 0.0
    %1605 = vmatprep.subr.mxu0 0.0
    %1606 = vmatpush2.msra.mxu0 0.0
    %1607 = vmatprep.subr.mxu0 0.0
    %1608 = vmatpush2.msra.mxu0 0.0
    %1609 = vmatprep.subr.mxu0 0.0
    %1610 = vmatpush2.msra.mxu0 0.0
    %1611 = vmatprep.subr.mxu0 0.0
    %1612 = vmatpush2.msra.mxu0 0.0
    %1613 = vmatprep.subr.mxu0 0.0
    %1614 = vmatpush2.msra.mxu0 0.0
    %1615 = vmatprep.subr.mxu0 0.0
    %1616 = vmatpush2.msra.mxu0 0.0
    %1617 = vmatprep.subr.mxu0 0.0
    %1618 = vmatpush2.msra.mxu0 0.0
    %1619 = vmatprep.mubr.f32.mxu0 0.0
    %1620 = vmatmul.mubr.f32.gmra.mxu0 %v1544
    %v1621 = vpop.f32.mrf.mxu0
    %v1622 = vadd.f32 0.0, %v1621
    %v1623 = vpop.f32.mrf.mxu0
    %1624 = vmatprep.mubr.f32.mxu0 0.0
    %1625 = vmatmul.mubr.f32.gmra.mxu0 %v1547
    %v1626 = vpop.f32.mrf.mxu0
    %v1627 = vadd.f32 0.0, %v1626
    %v1628 = vpop.f32.mrf.mxu0
    %1629 = vmatprep.mubr.f32.mxu0 0.0
    %1630 = vmatmul.mubr.f32.gmra.mxu0 %v1550
    %v1631 = vpop.f32.mrf.mxu0
    %v1632 = vadd.f32 0.0, %v1631
    %v1633 = vpop.f32.mrf.mxu0
    %1634 = vmatprep.mubr.f32.mxu0 0.0
    %1635 = vmatmul.mubr.f32.gmra.mxu0 %v1553
    %v1636 = vpop.f32.mrf.mxu0
    %v1637 = vadd.f32 0.0, %v1636
    %v1638 = vpop.f32.mrf.mxu0
    %1639 = vdwg.mxu0
    %1640 = vmatprep.subr.mxu0 0.0
    %1641 = vmatpush1.msra.mxu0 0.0
    %1642 = vmatprep.subr.mxu0 0.0
    %1643 = vmatpush1.msra.mxu0 0.0
    %1644 = vmatprep.subr.mxu0 0.0
    %1645 = vmatpush1.msra.mxu0 0.0
    %1646 = vmatprep.subr.mxu0 0.0
    %1647 = vmatpush1.msra.mxu0 0.0
    %1648 = vmatprep.subr.mxu0 0.0
    %1649 = vmatpush1.msra.mxu0 0.0
    %1650 = vmatprep.subr.mxu0 0.0
    %1651 = vmatpush1.msra.mxu0 0.0
    %1652 = vmatprep.subr.mxu0 0.0
    %1653 = vmatpush1.msra.mxu0 0.0
    %1654 = vmatprep.subr.mxu0 0.0
    %1655 = vmatpush1.msra.mxu0 0.0
    %1656 = vmatprep.subr.mxu0 0.0
    %1657 = vmatpush1.msra.mxu0 0.0
    %1658 = vmatprep.subr.mxu0 0.0
    %1659 = vmatpush1.msra.mxu0 0.0
    %1660 = vmatprep.subr.mxu0 0.0
    %1661 = vmatpush1.msra.mxu0 0.0
    %1662 = vmatprep.subr.mxu0 0.0
    %1663 = vmatpush1.msra.mxu0 0.0
    %1664 = vmatprep.subr.mxu0 0.0
    %1665 = vmatpush1.msra.mxu0 %v1637
    %1666 = vmatprep.subr.mxu0 0.0
    %1667 = vmatpush1.msra.mxu0 %v1632
    %1668 = vmatprep.subr.mxu0 0.0
    %1669 = vmatpush1.msra.mxu0 %v1627
    %1670 = vmatprep.subr.mxu0 0.0
    %1671 = vmatpush1.msra.mxu0 %v1622
    %1672 = vmatprep.subr.mxu0 0.0
    %1673 = vmatpush2.msra.mxu0 0.0
    %1674 = vmatprep.subr.mxu0 0.0
    %1675 = vmatpush2.msra.mxu0 0.0
    %1676 = vmatprep.subr.mxu0 0.0
    %1677 = vmatpush2.msra.mxu0 0.0
    %1678 = vmatprep.subr.mxu0 0.0
    %1679 = vmatpush2.msra.mxu0 0.0
    %1680 = vmatprep.subr.mxu0 0.0
    %1681 = vmatpush2.msra.mxu0 0.0
    %1682 = vmatprep.subr.mxu0 0.0
    %1683 = vmatpush2.msra.mxu0 0.0
    %1684 = vmatprep.subr.mxu0 0.0
    %1685 = vmatpush2.msra.mxu0 0.0
    %1686 = vmatprep.subr.mxu0 0.0
    %1687 = vmatpush2.msra.mxu0 0.0
    %1688 = vmatprep.subr.mxu0 0.0
    %1689 = vmatpush2.msra.mxu0 0.0
    %1690 = vmatprep.subr.mxu0 0.0
    %1691 = vmatpush2.msra.mxu0 0.0
    %1692 = vmatprep.subr.mxu0 0.0
    %1693 = vmatpush2.msra.mxu0 0.0
    %1694 = vmatprep.subr.mxu0 0.0
    %1695 = vmatpush2.msra.mxu0 0.0
    %1696 = vmatprep.subr.mxu0 0.0
    %1697 = vmatpush2.msra.mxu0 0.0
    %1698 = vmatprep.subr.mxu0 0.0
    %1699 = vmatpush2.msra.mxu0 0.0
    %1700 = vmatprep.subr.mxu0 0.0
    %1701 = vmatpush2.msra.mxu0 0.0
    %1702 = vmatprep.subr.mxu0 0.0
    %1703 = vmatpush2.msra.mxu0 0.0
    %1704 = vmatprep.mubr.f32.mxu0 0.0
    %1705 = vmatmul.mubr.f32.gmra.mxu0 %v667
    %v1706 = vpop.f32.mrf.mxu0
    %v1707 = vadd.f32 0.0, %v1706
    %v1708 = vpop.f32.mrf.mxu0
    %1709 = vmatprep.mubr.f32.mxu0 0.0
    %1710 = vmatmul.mubr.f32.gmra.mxu0 %v670
    %v1711 = vpop.f32.mrf.mxu0
    %v1712 = vadd.f32 0.0, %v1711
    %v1713 = vpop.f32.mrf.mxu0
    %1714 = vmatprep.mubr.f32.mxu0 0.0
    %1715 = vmatmul.mubr.f32.gmra.mxu0 %v673
    %v1716 = vpop.f32.mrf.mxu0
    %v1717 = vadd.f32 0.0, %v1716
    %v1718 = vpop.f32.mrf.mxu0
    %1719 = vmatprep.mubr.f32.mxu0 0.0
    %1720 = vmatmul.mubr.f32.gmra.mxu0 %v676
    %v1721 = vpop.f32.mrf.mxu0
    %v1722 = vadd.f32 0.0, %v1721
    %v1723 = vpop.f32.mrf.mxu0
    %1724 = vdwg.mxu0
    %1725 = vmatprep.subr.mxu0 0.0
    %1726 = vmatpush1.msra.mxu0 0.0
    %1727 = vmatprep.subr.mxu0 0.0
    %1728 = vmatpush1.msra.mxu0 0.0
    %1729 = vmatprep.subr.mxu0 0.0
    %1730 = vmatpush1.msra.mxu0 0.0
    %1731 = vmatprep.subr.mxu0 0.0
    %1732 = vmatpush1.msra.mxu0 0.0
    %1733 = vmatprep.subr.mxu0 0.0
    %1734 = vmatpush1.msra.mxu0 0.0
    %1735 = vmatprep.subr.mxu0 0.0
    %1736 = vmatpush1.msra.mxu0 0.0
    %1737 = vmatprep.subr.mxu0 0.0
    %1738 = vmatpush1.msra.mxu0 0.0
    %1739 = vmatprep.subr.mxu0 0.0
    %1740 = vmatpush1.msra.mxu0 0.0
    %1741 = vmatprep.subr.mxu0 0.0
    %1742 = vmatpush1.msra.mxu0 0.0
    %1743 = vmatprep.subr.mxu0 0.0
    %1744 = vmatpush1.msra.mxu0 0.0
    %1745 = vmatprep.subr.mxu0 0.0
    %1746 = vmatpush1.msra.mxu0 0.0
    %1747 = vmatprep.subr.mxu0 0.0
    %1748 = vmatpush1.msra.mxu0 0.0
    %1749 = vmatprep.subr.mxu0 0.0
    %1750 = vmatpush1.msra.mxu0 %v88
    %1751 = vmatprep.subr.mxu0 0.0
    %1752 = vmatpush1.msra.mxu0 %v87
    %1753 = vmatprep.subr.mxu0 0.0
    %1754 = vmatpush1.msra.mxu0 %v86
    %1755 = vmatprep.subr.mxu0 0.0
    %1756 = vmatpush1.msra.mxu0 %v85
    %1757 = vmatprep.subr.mxu0 0.0
    %1758 = vmatpush2.msra.mxu0 0.0
    %1759 = vmatprep.subr.mxu0 0.0
    %1760 = vmatpush2.msra.mxu0 0.0
    %1761 = vmatprep.subr.mxu0 0.0
    %1762 = vmatpush2.msra.mxu0 0.0
    %1763 = vmatprep.subr.mxu0 0.0
    %1764 = vmatpush2.msra.mxu0 0.0
    %1765 = vmatprep.subr.mxu0 0.0
    %1766 = vmatpush2.msra.mxu0 0.0
    %1767 = vmatprep.subr.mxu0 0.0
    %1768 = vmatpush2.msra.mxu0 0.0
    %1769 = vmatprep.subr.mxu0 0.0
    %1770 = vmatpush2.msra.mxu0 0.0
    %1771 = vmatprep.subr.mxu0 0.0
    %1772 = vmatpush2.msra.mxu0 0.0
    %1773 = vmatprep.subr.mxu0 0.0
    %1774 = vmatpush2.msra.mxu0 0.0
    %1775 = vmatprep.subr.mxu0 0.0
    %1776 = vmatpush2.msra.mxu0 0.0
    %1777 = vmatprep.subr.mxu0 0.0
    %1778 = vmatpush2.msra.mxu0 0.0
    %1779 = vmatprep.subr.mxu0 0.0
    %1780 = vmatpush2.msra.mxu0 0.0
    %1781 = vmatprep.subr.mxu0 0.0
    %1782 = vmatpush2.msra.mxu0 0.0
    %1783 = vmatprep.subr.mxu0 0.0
    %1784 = vmatpush2.msra.mxu0 0.0
    %1785 = vmatprep.subr.mxu0 0.0
    %1786 = vmatpush2.msra.mxu0 0.0
    %1787 = vmatprep.subr.mxu0 0.0
    %1788 = vmatpush2.msra.mxu0 0.0
    %1789 = vmatprep.mubr.f32.mxu0 0.0
    %1790 = vmatmul.mubr.f32.gmra.mxu0 %v1544
    %v1791 = vpop.f32.mrf.mxu0
    %v1792 = vadd.f32 0.0, %v1791
    %v1793 = vpop.f32.mrf.mxu0
    %1794 = vmatprep.mubr.f32.mxu0 0.0
    %1795 = vmatmul.mubr.f32.gmra.mxu0 %v1547
    %v1796 = vpop.f32.mrf.mxu0
    %v1797 = vadd.f32 0.0, %v1796
    %v1798 = vpop.f32.mrf.mxu0
    %1799 = vmatprep.mubr.f32.mxu0 0.0
    %1800 = vmatmul.mubr.f32.gmra.mxu0 %v1550
    %v1801 = vpop.f32.mrf.mxu0
    %v1802 = vadd.f32 0.0, %v1801
    %v1803 = vpop.f32.mrf.mxu0
    %1804 = vmatprep.mubr.f32.mxu0 0.0
    %1805 = vmatmul.mubr.f32.gmra.mxu0 %v1553
    %v1806 = vpop.f32.mrf.mxu0
    %v1807 = vadd.f32 0.0, %v1806
    %v1808 = vpop.f32.mrf.mxu0
    %1809 = vdwg.mxu0
    %1810 = vmatprep.subr.mxu0 0.0
    %1811 = vmatpush1.msra.mxu0 0.0
    %1812 = vmatprep.subr.mxu0 0.0
    %1813 = vmatpush1.msra.mxu0 0.0
    %1814 = vmatprep.subr.mxu0 0.0
    %1815 = vmatpush1.msra.mxu0 0.0
    %1816 = vmatprep.subr.mxu0 0.0
    %1817 = vmatpush1.msra.mxu0 0.0
    %1818 = vmatprep.subr.mxu0 0.0
    %1819 = vmatpush1.msra.mxu0 0.0
    %1820 = vmatprep.subr.mxu0 0.0
    %1821 = vmatpush1.msra.mxu0 0.0
    %1822 = vmatprep.subr.mxu0 0.0
    %1823 = vmatpush1.msra.mxu0 0.0
    %1824 = vmatprep.subr.mxu0 0.0
    %1825 = vmatpush1.msra.mxu0 0.0
    %1826 = vmatprep.subr.mxu0 0.0
    %1827 = vmatpush1.msra.mxu0 0.0
    %1828 = vmatprep.subr.mxu0 0.0
    %1829 = vmatpush1.msra.mxu0 0.0
    %1830 = vmatprep.subr.mxu0 0.0
    %1831 = vmatpush1.msra.mxu0 0.0
    %1832 = vmatprep.subr.mxu0 0.0
    %1833 = vmatpush1.msra.mxu0 0.0
    %1834 = vmatprep.subr.mxu0 0.0
    %1835 = vmatpush1.msra.mxu0 %v1807
    %1836 = vmatprep.subr.mxu0 0.0
    %1837 = vmatpush1.msra.mxu0 %v1802
    %1838 = vmatprep.subr.mxu0 0.0
    %1839 = vmatpush1.msra.mxu0 %v1797
    %1840 = vmatprep.subr.mxu0 0.0
    %1841 = vmatpush1.msra.mxu0 %v1792
    %1842 = vmatprep.subr.mxu0 0.0
    %1843 = vmatpush2.msra.mxu0 0.0
    %1844 = vmatprep.subr.mxu0 0.0
    %1845 = vmatpush2.msra.mxu0 0.0
    %1846 = vmatprep.subr.mxu0 0.0
    %1847 = vmatpush2.msra.mxu0 0.0
    %1848 = vmatprep.subr.mxu0 0.0
    %1849 = vmatpush2.msra.mxu0 0.0
    %1850 = vmatprep.subr.mxu0 0.0
    %1851 = vmatpush2.msra.mxu0 0.0
    %1852 = vmatprep.subr.mxu0 0.0
    %1853 = vmatpush2.msra.mxu0 0.0
    %1854 = vmatprep.subr.mxu0 0.0
    %1855 = vmatpush2.msra.mxu0 0.0
    %1856 = vmatprep.subr.mxu0 0.0
    %1857 = vmatpush2.msra.mxu0 0.0
    %1858 = vmatprep.subr.mxu0 0.0
    %1859 = vmatpush2.msra.mxu0 0.0
    %1860 = vmatprep.subr.mxu0 0.0
    %1861 = vmatpush2.msra.mxu0 0.0
    %1862 = vmatprep.subr.mxu0 0.0
    %1863 = vmatpush2.msra.mxu0 0.0
    %1864 = vmatprep.subr.mxu0 0.0
    %1865 = vmatpush2.msra.mxu0 0.0
    %1866 = vmatprep.subr.mxu0 0.0
    %1867 = vmatpush2.msra.mxu0 0.0
    %1868 = vmatprep.subr.mxu0 0.0
    %1869 = vmatpush2.msra.mxu0 0.0
    %1870 = vmatprep.subr.mxu0 0.0
    %1871 = vmatpush2.msra.mxu0 0.0
    %1872 = vmatprep.subr.mxu0 0.0
    %1873 = vmatpush2.msra.mxu0 0.0
    %1874 = vmatprep.mubr.f32.mxu0 0.0
    %1875 = vmatmul.mubr.f32.gmra.mxu0 %v667
    %v1876 = vpop.f32.mrf.mxu0
    %v1877 = vadd.f32 %v853, %v1876
    %v1878 = vpop.f32.mrf.mxu0
    %1879 = vmatprep.mubr.f32.mxu0 0.0
    %1880 = vmatmul.mubr.f32.gmra.mxu0 %v670
    %v1881 = vpop.f32.mrf.mxu0
    %v1882 = vadd.f32 %v855, %v1881
    %v1883 = vpop.f32.mrf.mxu0
    %1884 = vmatprep.mubr.f32.mxu0 0.0
    %1885 = vmatmul.mubr.f32.gmra.mxu0 %v673
    %v1886 = vpop.f32.mrf.mxu0
    %v1887 = vadd.f32 %v857, %v1886
    %v1888 = vpop.f32.mrf.mxu0
    %1889 = vmatprep.mubr.f32.mxu0 0.0
    %1890 = vmatmul.mubr.f32.gmra.mxu0 %v676
    %v1891 = vpop.f32.mrf.mxu0
    %v1892 = vadd.f32 %v859, %v1891
    %v1893 = vpop.f32.mrf.mxu0
    %1894 = vdwg.mxu0
    %1896 = vset.pattern.permute.xlu0 0
    %1897 = vperm.xlu0 %1896, %v1877
    %v1898 = vpop.permute.xlu0 %1897
    %1901 = vset.pattern.permute.xlu0 0
    %1902 = vperm.xlu0 %1901, %v1882
    %v1903 = vpop.permute.xlu0 %1902
    %1906 = vset.pattern.permute.xlu0 0
    %1907 = vperm.xlu0 %1906, %v1887
    %v1908 = vpop.permute.xlu0 %1907
    %1911 = vset.pattern.permute.xlu0 0
    %1912 = vperm.xlu0 %1911, %v1892
    %v1913 = vpop.permute.xlu0 %1912
    %v1916 = vsel %vm318, %v1707, 0
    %v1919 = vsel %vm318, %v1712, 0
    %v1922 = vsel %vm318, %v1717, 0
    %v1925 = vsel %vm318, %v1722, 0
    %1927 = vmatprep.subr.mxu0 0.0
    %1928 = vmatpush1.msra.mxu0 0.0
    %1929 = vmatprep.subr.mxu0 0.0
    %1930 = vmatpush1.msra.mxu0 0.0
    %1931 = vmatprep.subr.mxu0 0.0
    %1932 = vmatpush1.msra.mxu0 0.0
    %1933 = vmatprep.subr.mxu0 0.0
    %1934 = vmatpush1.msra.mxu0 0.0
    %1935 = vmatprep.subr.mxu0 0.0
    %1936 = vmatpush1.msra.mxu0 0.0
    %1937 = vmatprep.subr.mxu0 0.0
    %1938 = vmatpush1.msra.mxu0 0.0
    %1939 = vmatprep.subr.mxu0 0.0
    %1940 = vmatpush1.msra.mxu0 0.0
    %1941 = vmatprep.subr.mxu0 0.0
    %1942 = vmatpush1.msra.mxu0 0.0
    %1943 = vmatprep.subr.mxu0 0.0
    %1944 = vmatpush1.msra.mxu0 0.0
    %1945 = vmatprep.subr.mxu0 0.0
    %1946 = vmatpush1.msra.mxu0 0.0
    %1947 = vmatprep.subr.mxu0 0.0
    %1948 = vmatpush1.msra.mxu0 0.0
    %1949 = vmatprep.subr.mxu0 0.0
    %1950 = vmatpush1.msra.mxu0 0.0
    %1951 = vmatprep.subr.mxu0 %v1103
    %1952 = vmatpush1.msra.mxu0 %v1102
    %1953 = vmatprep.subr.mxu0 %v1101
    %1954 = vmatpush1.msra.mxu0 %v1100
    %1955 = vmatprep.subr.mxu0 %v1099
    %1956 = vmatpush1.msra.mxu0 %v1098
    %1957 = vmatprep.subr.mxu0 %v1097
    %1958 = vmatpush1.msra.mxu0 %v1096
    %1959 = vmatprep.subr.mxu0 0.0
    %1960 = vmatpush2.msra.mxu0 0.0
    %1961 = vmatprep.subr.mxu0 0.0
    %1962 = vmatpush2.msra.mxu0 0.0
    %1963 = vmatprep.subr.mxu0 0.0
    %1964 = vmatpush2.msra.mxu0 0.0
    %1965 = vmatprep.subr.mxu0 0.0
    %1966 = vmatpush2.msra.mxu0 0.0
    %1967 = vmatprep.subr.mxu0 0.0
    %1968 = vmatpush2.msra.mxu0 0.0
    %1969 = vmatprep.subr.mxu0 0.0
    %1970 = vmatpush2.msra.mxu0 0.0
    %1971 = vmatprep.subr.mxu0 0.0
    %1972 = vmatpush2.msra.mxu0 0.0
    %1973 = vmatprep.subr.mxu0 0.0
    %1974 = vmatpush2.msra.mxu0 0.0
    %1975 = vmatprep.subr.mxu0 0.0
    %1976 = vmatpush2.msra.mxu0 0.0
    %1977 = vmatprep.subr.mxu0 0.0
    %1978 = vmatpush2.msra.mxu0 0.0
    %1979 = vmatprep.subr.mxu0 0.0
    %1980 = vmatpush2.msra.mxu0 0.0
    %1981 = vmatprep.subr.mxu0 0.0
    %1982 = vmatpush2.msra.mxu0 0.0
    %1983 = vmatprep.subr.mxu0 0.0
    %1984 = vmatpush2.msra.mxu0 0.0
    %1985 = vmatprep.subr.mxu0 0.0
    %1986 = vmatpush2.msra.mxu0 0.0
    %1987 = vmatprep.subr.mxu0 0.0
    %1988 = vmatpush2.msra.mxu0 0.0
    %1989 = vmatprep.subr.mxu0 0.0
    %1990 = vmatpush2.msra.mxu0 0.0
    %1991 = vmatprep.mubr.f32.mxu0 0.0
    %1992 = vmatmul.mubr.f32.gmra.mxu0 %v1916
    %v1993 = vpop.f32.mrf.mxu0
    %v1994 = vadd.f32 %v1898, %v1993
    %v1995 = vpop.f32.mrf.mxu0
    %v1996 = vadd.f32 %v1898, %v1995
    %1997 = vmatprep.mubr.f32.mxu0 0.0
    %1998 = vmatmul.mubr.f32.gmra.mxu0 %v1919
    %v1999 = vpop.f32.mrf.mxu0
    %v2000 = vadd.f32 %v1903, %v1999
    %v2001 = vpop.f32.mrf.mxu0
    %v2002 = vadd.f32 %v1903, %v2001
    %2003 = vmatprep.mubr.f32.mxu0 0.0
    %2004 = vmatmul.mubr.f32.gmra.mxu0 %v1922
    %v2005 = vpop.f32.mrf.mxu0
    %v2006 = vadd.f32 %v1908, %v2005
    %v2007 = vpop.f32.mrf.mxu0
    %v2008 = vadd.f32 %v1908, %v2007
    %2009 = vmatprep.mubr.f32.mxu0 0.0
    %2010 = vmatmul.mubr.f32.gmra.mxu0 %v1925
    %v2011 = vpop.f32.mrf.mxu0
    %v2012 = vadd.f32 %v1913, %v2011
    %v2013 = vpop.f32.mrf.mxu0
    %v2014 = vadd.f32 %v1913, %v2013
    %2015 = vdwg.mxu0
    %v2016 = vadd.f32 %v1994, %v1087
    %v2017 = vadd.f32 %v1996, %v1088
    %v2018 = vadd.f32 %v2000, %v1089
    %v2019 = vadd.f32 %v2002, %v1090
    %v2020 = vadd.f32 %v2006, %v1091
    %v2021 = vadd.f32 %v2008, %v1092
    %v2022 = vadd.f32 %v2012, %v1093
    %v2023 = vadd.f32 %v2014, %v1094
    %s2024 = scalar_lea.vmem [#allocation8], 64
    %2025 = vst [vmem:[%s2024] sm:$0xff] %v2016
    %2026 = vst [vmem:[%s2024 + $0x8] sm:$0xff] %v2017
    %2027 = vst [vmem:[%s2024 + $0x10] sm:$0xff] %v2018
    %2028 = vst [vmem:[%s2024 + $0x18] sm:$0xff] %v2019
    %2029 = vst [vmem:[%s2024 + $0x20] sm:$0xff] %v2020
    %2030 = vst [vmem:[%s2024 + $0x28] sm:$0xff] %v2021
    %2031 = vst [vmem:[%s2024 + $0x30] sm:$0xff] %v2022
    %2032 = vst [vmem:[%s2024 + $0x38] sm:$0xff] %v2023
    // Predicated region
    $region34: #{tpu_custom_call.1} parent=1 // pred_check
      _
    $region35: #{tpu_custom_call.1} parent=1 // pred_check_branch
      %2034 = sbr.rel (0) target = $region37
    $region36: #{tpu_custom_call.1} parent=1 // pred_region
      %s2036 = ssub.s32 2048, 2048
      %2037 = vsyncadd [#allocation4], %s2036
      %s2038 = sshll.u32 [#allocation8], 4
      %s2039 = int_to_ptr.vmem [resolvable:$true] %s2038
      %2044 = dma.vmem_to_hbm [thread:$0]  %s2039, 2048, %s5, [#allocation4], 256, 256, 16
    $region37: #{tpu_custom_call.1} parent=1 // pred_fallthru
      _
    // Predicated region
    $region38: #{tpu_custom_call.1} parent=1 // pred_check
      _
    $region39: #{tpu_custom_call.1} parent=1 // pred_check_branch
      %2046 = sbr.rel (0) target = $region41
    $region40: #{tpu_custom_call.1} parent=1 // pred_region
      %2047 = dma.done [#allocation4], 2048
    $region41: #{tpu_custom_call.1} parent=1 // pred_fallthru
      _
    %2048 = vsyncpa [#allocation3], 1
    %2049 = vsyncpa [#allocation6], 1
    %2050 = vsyncpa [#allocation4], 1

</llo_original>
